<compile_context>
chip_gen: v7x
topology: tpu7x:2x2x1
jax: 0.10.0
libtpu: 0.0.40
codegen_flags: <defaults>
</compile_context>

<pallas_src>
import functools

import jax
import jax.numpy as jnp
from jax.experimental import pallas as pl
from jax.experimental.pallas import tpu as pltpu

_LANE = 128


def _round_up(n, m):
    return -(-n // m) * m


# ----------------------------------------------------------------------------
# One-time parameter packing (run OUTSIDE the jitted forward)
# ----------------------------------------------------------------------------
def pack_params(params):
    """Pack every weight/bias into one lane-padded f32 slab (single DMA).

    Conv weights (K, Cin, Cout) are pre-reshaped to (K*Cin, Cout) so each
    causal conv becomes a single stacked-tap matmul in-kernel.  Each segment
    starts at an 8-aligned row so all in-kernel views are sublane-aligned.
    """
    segs = []
    cfgs = []
    for i, blk in enumerate(params["blocks"]):
        K, cin, cout = blk["w1"].shape
        cfgs.append(dict(K=int(K), d=int(blk["dilation"]), cin=int(cin),
                         cout=int(cout), has_ds="wd" in blk))
        segs.append((f"b{i}_w1", jnp.reshape(blk["w1"], (K * cin, cout))))
        segs.append((f"b{i}_b1", jnp.reshape(blk["b1"], (1, cout))))
        segs.append((f"b{i}_w2", jnp.reshape(blk["w2"], (K * cout, cout))))
        segs.append((f"b{i}_b2", jnp.reshape(blk["b2"], (1, cout))))
        if "wd" in blk:
            segs.append((f"b{i}_wd", jnp.reshape(blk["wd"], (cin, cout))))
            segs.append((f"b{i}_bd", jnp.reshape(blk["bd"], (1, cout))))
    out_ch = int(params["lt_w"].shape[1])
    pred_len = int(params["lp_w"].shape[1])
    segs.append(("lt_w", params["lt_w"]))
    segs.append(("lt_b", jnp.reshape(params["lt_b"], (1, out_ch))))
    segs.append(("lp_w", params["lp_w"]))
    segs.append(("lp_b", jnp.reshape(params["lp_b"], (1, pred_len))))

    meta = {}
    total = 0
    for name, a in segs:
        r, c = int(a.shape[0]), int(a.shape[1])
        assert c <= _LANE, f"{name}: {c} cols > {_LANE}"
        meta[name] = (total, r, c)
        total += _round_up(max(r, 1), 8)
    slab = jnp.zeros((total, _LANE), jnp.float32)
    for name, a in segs:
        off, r, c = meta[name]
        slab = slab.at[off:off + r, :c].set(a.astype(jnp.float32))
    return dict(slab=slab, meta=meta, cfgs=cfgs, out_ch=out_ch,
                pred_len=pred_len)


# ----------------------------------------------------------------------------
# Fused Pallas kernel (whole forward for one batch chunk per grid step)
# ----------------------------------------------------------------------------
def _make_kernel(cfgs, meta, Bt, L, C0, out_ch, pred_len):
    R = Bt * L  # time-major rows per grid step

    def _eye(n):
        r = jax.lax.broadcasted_iota(jnp.int32, (n, n), 0)
        c = jax.lax.broadcasted_iota(jnp.int32, (n, n), 1)
        return jnp.where(r == c, 1.0, 0.0).astype(jnp.float32)

    def _mxu_t(eye, x):
        # transpose(x) = eye(n) @ x^T, via the standard A@B^T dot pattern.
        return jax.lax.dot_general(
            eye, x, dimension_numbers=(((1,), (1,)), ((), ())),
            preferred_element_type=jnp.float32)

    def kernel(x_ref, w_ref, o_ref):
        def wv(name):
            off, r, c = meta[name]
            return w_ref[off:off + r, 0:c]          # static, 8-aligned view

        # ---- NCL input tile -> (Bt*L, C0) time-major, all in VMEM/vregs ----
        eye_L = _eye(L)
        h = jnp.concatenate(
            [_mxu_t(eye_L, x_ref[b].astype(jnp.float32)) for b in range(Bt)],
            axis=0)                                                   # (R, C0)

        # per-row time index inside its sample (for causal tap masking)
        tmod = jax.lax.broadcasted_iota(jnp.int32, (R, 1), 0) % L

        def shift_rows(v, s):
            """v shifted down by s rows; in-sample rows with t < s zeroed."""
            if s <= 0:
                return v
            cin = v.shape[1]
            if s >= L:
                return jnp.zeros((R, cin), jnp.float32)
            shifted = jnp.concatenate(
                [jnp.zeros((s, cin), jnp.float32), v[:R - s, :]], axis=0)
            return jnp.where(tmod >= s, shifted, 0.0)

        def causal_conv(v, wname, bname, K, d, relu):
            # stacked-tap form: ONE matmul per conv instead of K
            taps = [shift_rows(v, (K - 1 - k) * d) for k in range(K)]
            hp = jnp.concatenate(taps, axis=1)                    # (R, K*Cin)
            acc = jnp.dot(hp, wv(wname),
                          preferred_element_type=jnp.float32) + wv(bname)
            return jnp.maximum(acc, 0.0) if relu else acc

        for i, cfg in enumerate(cfgs):
            K, d = cfg["K"], cfg["d"]
            out = causal_conv(h, f"b{i}_w1", f"b{i}_b1", K, d, True)
            out = causal_conv(out, f"b{i}_w2", f"b{i}_b2", K, d, True)
            if cfg["has_ds"]:
                res = (jnp.dot(h, wv(f"b{i}_wd"),
                               preferred_element_type=jnp.float32)
                       + wv(f"b{i}_bd"))
            else:
                res = h
            h = jnp.maximum(out + res, 0.0)    # residual + ReLU in epilogue

        # linear_tcn over channels: (R, C_last) -> (R, out_ch)
        feats = (jnp.dot(h, wv("lt_w"), preferred_element_type=jnp.float32)
                 + wv("lt_b"))

        # linear_predictor over time, per sample; no (B, C, L) transpose is
        # ever materialized in HBM.
        feats_t = _mxu_t(_eye(out_ch), feats)                  # (out_ch, R)
        lp_w, lp_b = wv("lp_w"), wv("lp_b")
        preds = []
        for b in range(Bt):
            p = (jnp.dot(feats_t[:, b * L:(b + 1) * L], lp_w,
                         preferred_element_type=jnp.float32) + lp_b)
            preds.append(jnp.reshape(p, (1, out_ch, pred_len)))
        # single slab store per grid step
        o_ref[...] = jnp.concatenate(preds, axis=0).astype(o_ref.dtype)

    return kernel


def _pick_bt(B, L, target_rows=256):
    """Samples per grid step so Bt*L ~ MXU row-fill target; Bt divides B."""
    if B * L <= target_rows:
        return B
    bt = max(1, target_rows // L)
    while bt > 1 and B % bt:
        bt -= 1
    return max(bt, 1)


def tcn_block_fading_forward(slab, x_ncl, *, meta, cfgs, out_ch, pred_len):
    """x_ncl: (B, input_channels, memory_length) -- PyTorch NCL layout."""
    B, C0, L = x_ncl.shape
    Bt = _pick_bt(B, L)
    kernel = _make_kernel(cfgs, meta, Bt, L, C0, out_ch, pred_len)
    return pl.pallas_call(
        kernel,
        out_shape=jax.ShapeDtypeStruct((B, out_ch, pred_len), x_ncl.dtype),
        grid=(B // Bt,),
        in_specs=[
            # NCL tile straight from HBM -- no wrapper-side transpose launch
            pl.BlockSpec((Bt, C0, L), lambda i: (i, 0, 0)),
            # all weights: one resident slab, one DMA, reused by every step
            pl.BlockSpec(slab.shape, lambda i: (0, 0)),
        ],
        out_specs=pl.BlockSpec((Bt, out_ch, pred_len), lambda i: (i, 0, 0)),
        compiler_params=pltpu.CompilerParams(
            dimension_semantics=("parallel",)),
    )(x_ncl, slab)


# ----------------------------------------------------------------------------
# Parameter setup (plain JAX)
# ----------------------------------------------------------------------------
def init_params(key, input_channels, num_inner_channels, kernel_size,
                output_channels, memory_length, pred_length):
    params = {"blocks": []}
    scale = 0.1
    in_ch = input_channels
    for i, out_ch in enumerate(num_inner_channels):
        key, k1, k2, k3, k4, k5, k6 = jax.random.split(key, 7)
        blk = {
            "w1": scale * jax.random.normal(k1, (kernel_size, in_ch, out_ch),
                                            jnp.float32),
            "b1": scale * jax.random.normal(k2, (out_ch,), jnp.float32),
            "w2": scale * jax.random.normal(k3, (kernel_size, out_ch, out_ch),
                                            jnp.float32),
            "b2": scale * jax.random.normal(k4, (out_ch,), jnp.float32),
            "dilation": 2 ** i,
        }
        if in_ch != out_ch:
            blk["wd"] = scale * jax.random.normal(k5, (1, in_ch, out_ch),
                                                  jnp.float32)
            blk["bd"] = scale * jax.random.normal(k6, (out_ch,), jnp.float32)
        params["blocks"].append(blk)
        in_ch = out_ch

    key, k1, k2, k3, k4 = jax.random.split(key, 5)
    params["lt_w"] = scale * jax.random.normal(
        k1, (num_inner_channels[-1], output_channels), jnp.float32)
    params["lt_b"] = scale * jax.random.normal(k2, (output_channels,),
                                               jnp.float32)
    params["lp_w"] = scale * jax.random.normal(
        k3, (memory_length, pred_length), jnp.float32)
    params["lp_b"] = scale * jax.random.normal(k4, (pred_length,), jnp.float32)
    return params


# ----------------------------------------------------------------------------
# Pure-JAX reference (for sanity check)
# ----------------------------------------------------------------------------
_HI = jax.lax.Precision.HIGHEST


def _ref_conv(x, w, b, d, relu):
    B, L, _ = x.shape
    K, _, Cout = w.shape
    pad = (K - 1) * d
    xp = jnp.pad(x, ((0, 0), (pad, 0), (0, 0)))
    acc = jnp.zeros((B, L, Cout), jnp.float32)
    for k in range(K):
        acc = acc + jnp.einsum("blc,co->blo", xp[:, k * d:k * d + L, :], w[k],
                               precision=_HI)
    acc = acc + b
    return jnp.maximum(acc, 0.0) if relu else acc


def reference_forward(params, x_ncl):
    h = jnp.transpose(x_ncl, (0, 2, 1))
    for blk in params["blocks"]:
        d = blk["dilation"]
        out = _ref_conv(h, blk["w1"], blk["b1"], d, True)
        out = _ref_conv(out, blk["w2"], blk["b2"], d, True)
        res = _ref_conv(h, blk["wd"], blk["bd"], 1, False) if "wd" in blk else h
        h = jnp.maximum(out + res, 0.0)
    feats = (jnp.einsum("blc,co->blo", h, params["lt_w"], precision=_HI)
             + params["lt_b"])
    feats_ncl = jnp.transpose(feats, (0, 2, 1))
    return (jnp.einsum("bcl,lp->bcp", feats_ncl, params["lp_w"], precision=_HI)
            + params["lp_b"])


# ----------------------------------------------------------------------------
if __name__ == "__main__":
    # module hyperparameters (small, consistent with the torch module)
    batch = 2
    input_channels = 4
    memory_length = 16
    num_inner_channels = [8, 8]
    kernel_size = 3
    output_channels = 3
    pred_length = 1
    dropout = 0.1  # unused in eval mode

    key = jax.random.PRNGKey(0)
    key, pk, xk = jax.random.split(key, 3)
    params = init_params(pk, input_channels, num_inner_channels, kernel_size,
                         output_channels, memory_length, pred_length)
    x = jax.random.normal(xk, (batch, input_channels, memory_length),
                          jnp.float32)

    packed = pack_params(params)   # one-time packing, outside the jitted fwd
    fwd = jax.jit(functools.partial(
        tcn_block_fading_forward,
        meta=packed["meta"], cfgs=packed["cfgs"],
        out_ch=packed["out_ch"], pred_len=packed["pred_len"]))

    out = fwd(packed["slab"], x)
    jax.block_until_ready(out)

    assert out.shape == (batch, output_channels, pred_length), out.shape
    ref = reference_forward(params, x)
    # Tolerance leaves headroom for a possible reduced-precision MXU pass on
    # f32 dots; structural/indexing bugs would produce O(1e-1) errors.
    err = float(jnp.max(jnp.abs(out - ref)))
    assert jnp.allclose(out, ref, atol=2e-3, rtol=2e-3), err

    print("KERNEL_OK")
</pallas_src>

<mosaic_0001>
module attributes {stable_mosaic.version = 11 : i64} {
  func.func @kernel(%arg0: i32, %arg1: memref<2x4x16xf32, #tpu.memory_space<vmem>>, %arg2: memref<176x128xf32, #tpu.memory_space<vmem>>, %arg3: memref<2x3x1xf32, #tpu.memory_space<vmem>>) attributes {dimension_semantics = [#tpu.dimension_semantics<parallel>], iteration_bounds = array<i64: 1>, scalar_prefetch = 0 : i64, scratch_operands = 0 : i64, tpu.core_type = #tpu.core_type<tc>, window_params = [{transform_indices = @transform_0, window_bounds = array<i64: 2, 4, 16>}, {pipeline_mode = #tpu.pipeline_mode<synchronous>, transform_indices = @transform_1, window_bounds = array<i64: 176, 128>}, {transform_indices = @transform_2, window_bounds = array<i64: 2, 3, 1>}]} {
    %0 = tpu.iota {dimensions = array<i32: 0>} : vector<16x16xi32>
    %1 = tpu.iota {dimensions = array<i32: 1>} : vector<16x16xi32>
    %2 = arith.cmpi eq, %0, %1 : vector<16x16xi32>
    %cst = arith.constant 1.000000e+00 : f32
    %cst_0 = arith.constant 0.000000e+00 : f32
    %3 = vector.broadcast %cst : f32 to vector<16x16xf32>
    %4 = vector.broadcast %cst_0 : f32 to vector<16x16xf32>
    %5 = arith.select %2, %3, %4 : vector<16x16xi1>, vector<16x16xf32>
    %c0 = arith.constant 0 : index
    %c0_1 = arith.constant 0 : index
    %c0_2 = arith.constant 0 : index
    %6 = vector.load %arg1[%c0, %c0_1, %c0_2] : memref<2x4x16xf32, #tpu.memory_space<vmem>>, vector<1x4x16xf32>
    %7 = vector.shape_cast %6 : vector<1x4x16xf32> to vector<4x16xf32>
    %cst_3 = arith.constant dense<0.000000e+00> : vector<16x4xf32>
    %8 = tpu.matmul %5, %7, %cst_3 {dimension_numbers = #tpu.dot_dimension_numbers<[1], [1], [0], [0], [0, 0, 1, 0], [], []>} : vector<16x16xf32>, vector<4x16xf32>, vector<16x4xf32> -> vector<16x4xf32>
    %c1 = arith.constant 1 : index
    %c0_4 = arith.constant 0 : index
    %c0_5 = arith.constant 0 : index
    %9 = vector.load %arg1[%c1, %c0_4, %c0_5] : memref<2x4x16xf32, #tpu.memory_space<vmem>>, vector<1x4x16xf32>
    %10 = vector.shape_cast %9 : vector<1x4x16xf32> to vector<4x16xf32>
    %cst_6 = arith.constant dense<0.000000e+00> : vector<16x4xf32>
    %11 = tpu.matmul %5, %10, %cst_6 {dimension_numbers = #tpu.dot_dimension_numbers<[1], [1], [0], [0], [0, 0, 1, 0], [], []>} : vector<16x16xf32>, vector<4x16xf32>, vector<16x4xf32> -> vector<16x4xf32>
    %12 = tpu.concatenate %8, %11 in 0 : vector<16x4xf32>, vector<16x4xf32> -> vector<32x4xf32>
    %13 = tpu.iota {dimensions = array<i32: 0>} : vector<32x1xi32>
    %c16_i32 = arith.constant 16 : i32
    %c0_i32 = arith.constant 0 : i32
    %14 = arith.cmpi eq, %c16_i32, %c0_i32 : i32
    %c1_i32 = arith.constant 1 : i32
    %15 = arith.select %14, %c1_i32, %c16_i32 : i32
    %16 = vector.broadcast %15 : i32 to vector<32x1xi32>
    %17 = arith.remsi %13, %16 : vector<32x1xi32>
    %c0_i32_7 = arith.constant 0 : i32
    %18 = vector.broadcast %c0_i32_7 : i32 to vector<32x1xi32>
    %19 = arith.cmpi ne, %17, %18 : vector<32x1xi32>
    %c0_i32_8 = arith.constant 0 : i32
    %20 = vector.broadcast %c0_i32_8 : i32 to vector<32x1xi32>
    %21 = arith.cmpi slt, %17, %20 : vector<32x1xi32>
    %c0_i32_9 = arith.constant 0 : i32
    %22 = arith.cmpi slt, %15, %c0_i32_9 : i32
    %23 = vector.broadcast %22 : i1 to vector<32x1xi1>
    %24 = vector.broadcast %23 : vector<32x1xi1> to vector<32x1xi1>
    %25 = arith.xori %21, %24 : vector<32x1xi1>
    %26 = arith.andi %25, %19 : vector<32x1xi1>
    %27 = vector.broadcast %15 : i32 to vector<32x1xi32>
    %28 = arith.addi %17, %27 : vector<32x1xi32>
    %29 = arith.select %26, %28, %17 : vector<32x1xi1>, vector<32x1xi32>
    %cst_10 = arith.constant 0.000000e+00 : f32
    %30 = vector.broadcast %cst_10 : f32 to vector<2x4xf32>
    %31 = vector.extract_strided_slice %12 {offsets = [0, 0], sizes = [30, 4], strides = [1, 1]} : vector<32x4xf32> to vector<30x4xf32>
    %32 = tpu.concatenate %30, %31 in 0 : vector<2x4xf32>, vector<30x4xf32> -> vector<32x4xf32>
    %c2_i32 = arith.constant 2 : i32
    %33 = vector.broadcast %c2_i32 : i32 to vector<32x1xi32>
    %34 = arith.cmpi sge, %29, %33 : vector<32x1xi32>
    %cst_11 = arith.constant 0.000000e+00 : f32
    %35 = vector.shape_cast %34 : vector<32x1xi1> to vector<32x1xi1>
    %36 = vector.broadcast %35 : vector<32x1xi1> to vector<32x4xi1>
    %37 = vector.broadcast %cst_11 : f32 to vector<32x4xf32>
    %38 = arith.select %36, %32, %37 : vector<32x4xi1>, vector<32x4xf32>
    %cst_12 = arith.constant 0.000000e+00 : f32
    %39 = vector.broadcast %cst_12 : f32 to vector<1x4xf32>
    %40 = vector.extract_strided_slice %12 {offsets = [0, 0], sizes = [31, 4], strides = [1, 1]} : vector<32x4xf32> to vector<31x4xf32>
    %41 = tpu.concatenate %39, %40 in 0 : vector<1x4xf32>, vector<31x4xf32> -> vector<32x4xf32>
    %c1_i32_13 = arith.constant 1 : i32
    %42 = vector.broadcast %c1_i32_13 : i32 to vector<32x1xi32>
    %43 = arith.cmpi sge, %29, %42 : vector<32x1xi32>
    %cst_14 = arith.constant 0.000000e+00 : f32
    %44 = vector.shape_cast %43 : vector<32x1xi1> to vector<32x1xi1>
    %45 = vector.broadcast %44 : vector<32x1xi1> to vector<32x4xi1>
    %46 = vector.broadcast %cst_14 : f32 to vector<32x4xf32>
    %47 = arith.select %45, %41, %46 : vector<32x4xi1>, vector<32x4xf32>
    %48 = tpu.concatenate %38, %47, %12 in 1 : vector<32x4xf32>, vector<32x4xf32>, vector<32x4xf32> -> vector<32x12xf32>
    %c0_15 = arith.constant 0 : index
    %c0_16 = arith.constant 0 : index
    %49 = vector.load %arg2[%c0_15, %c0_16] : memref<176x128xf32, #tpu.memory_space<vmem>>, vector<12x8xf32>
    %cst_17 = arith.constant dense<0.000000e+00> : vector<32x8xf32>
    %50 = tpu.matmul %48, %49, %cst_17 {dimension_numbers = #tpu.dot_dimension_numbers<[1], [0], [0], [1], [0, 0, 1, 1], [], []>} : vector<32x12xf32>, vector<12x8xf32>, vector<32x8xf32> -> vector<32x8xf32>
    %c16 = arith.constant 16 : index
    %c0_18 = arith.constant 0 : index
    %51 = vector.load %arg2[%c16, %c0_18] : memref<176x128xf32, #tpu.memory_space<vmem>>, vector<1x8xf32>
    %52 = vector.broadcast %51 : vector<1x8xf32> to vector<32x8xf32>
    %53 = arith.addf %50, %52 : vector<32x8xf32>
    %cst_19 = arith.constant 0.000000e+00 : f32
    %54 = vector.broadcast %cst_19 : f32 to vector<32x8xf32>
    %55 = arith.maximumf %53, %54 : vector<32x8xf32>
    %cst_20 = arith.constant 0.000000e+00 : f32
    %56 = vector.broadcast %cst_20 : f32 to vector<2x8xf32>
    %57 = vector.extract_strided_slice %55 {offsets = [0, 0], sizes = [30, 8], strides = [1, 1]} : vector<32x8xf32> to vector<30x8xf32>
    %58 = tpu.concatenate %56, %57 in 0 : vector<2x8xf32>, vector<30x8xf32> -> vector<32x8xf32>
    %c2_i32_21 = arith.constant 2 : i32
    %59 = vector.broadcast %c2_i32_21 : i32 to vector<32x1xi32>
    %60 = arith.cmpi sge, %29, %59 : vector<32x1xi32>
    %cst_22 = arith.constant 0.000000e+00 : f32
    %61 = vector.shape_cast %60 : vector<32x1xi1> to vector<32x1xi1>
    %62 = vector.broadcast %61 : vector<32x1xi1> to vector<32x8xi1>
    %63 = vector.broadcast %cst_22 : f32 to vector<32x8xf32>
    %64 = arith.select %62, %58, %63 : vector<32x8xi1>, vector<32x8xf32>
    %cst_23 = arith.constant 0.000000e+00 : f32
    %65 = vector.broadcast %cst_23 : f32 to vector<1x8xf32>
    %66 = vector.extract_strided_slice %55 {offsets = [0, 0], sizes = [31, 8], strides = [1, 1]} : vector<32x8xf32> to vector<31x8xf32>
    %67 = tpu.concatenate %65, %66 in 0 : vector<1x8xf32>, vector<31x8xf32> -> vector<32x8xf32>
    %c1_i32_24 = arith.constant 1 : i32
    %68 = vector.broadcast %c1_i32_24 : i32 to vector<32x1xi32>
    %69 = arith.cmpi sge, %29, %68 : vector<32x1xi32>
    %cst_25 = arith.constant 0.000000e+00 : f32
    %70 = vector.shape_cast %69 : vector<32x1xi1> to vector<32x1xi1>
    %71 = vector.broadcast %70 : vector<32x1xi1> to vector<32x8xi1>
    %72 = vector.broadcast %cst_25 : f32 to vector<32x8xf32>
    %73 = arith.select %71, %67, %72 : vector<32x8xi1>, vector<32x8xf32>
    %74 = tpu.concatenate %64, %73, %55 in 1 : vector<32x8xf32>, vector<32x8xf32>, vector<32x8xf32> -> vector<32x24xf32>
    %c24 = arith.constant 24 : index
    %c0_26 = arith.constant 0 : index
    %75 = vector.load %arg2[%c24, %c0_26] : memref<176x128xf32, #tpu.memory_space<vmem>>, vector<24x8xf32>
    %cst_27 = arith.constant dense<0.000000e+00> : vector<32x8xf32>
    %76 = tpu.matmul %74, %75, %cst_27 {dimension_numbers = #tpu.dot_dimension_numbers<[1], [0], [0], [1], [0, 0, 1, 1], [], []>} : vector<32x24xf32>, vector<24x8xf32>, vector<32x8xf32> -> vector<32x8xf32>
    %c48 = arith.constant 48 : index
    %c0_28 = arith.constant 0 : index
    %77 = vector.load %arg2[%c48, %c0_28] : memref<176x128xf32, #tpu.memory_space<vmem>>, vector<1x8xf32>
    %78 = vector.broadcast %77 : vector<1x8xf32> to vector<32x8xf32>
    %79 = arith.addf %76, %78 : vector<32x8xf32>
    %cst_29 = arith.constant 0.000000e+00 : f32
    %80 = vector.broadcast %cst_29 : f32 to vector<32x8xf32>
    %81 = arith.maximumf %79, %80 : vector<32x8xf32>
    %c56 = arith.constant 56 : index
    %c0_30 = arith.constant 0 : index
    %82 = vector.load %arg2[%c56, %c0_30] : memref<176x128xf32, #tpu.memory_space<vmem>>, vector<4x8xf32>
    %cst_31 = arith.constant dense<0.000000e+00> : vector<32x8xf32>
    %83 = tpu.matmul %12, %82, %cst_31 {dimension_numbers = #tpu.dot_dimension_numbers<[1], [0], [0], [1], [0, 0, 1, 1], [], []>} : vector<32x4xf32>, vector<4x8xf32>, vector<32x8xf32> -> vector<32x8xf32>
    %c64 = arith.constant 64 : index
    %c0_32 = arith.constant 0 : index
    %84 = vector.load %arg2[%c64, %c0_32] : memref<176x128xf32, #tpu.memory_space<vmem>>, vector<1x8xf32>
    %85 = vector.broadcast %84 : vector<1x8xf32> to vector<32x8xf32>
    %86 = arith.addf %83, %85 : vector<32x8xf32>
    %87 = arith.addf %81, %86 : vector<32x8xf32>
    %cst_33 = arith.constant 0.000000e+00 : f32
    %88 = vector.broadcast %cst_33 : f32 to vector<32x8xf32>
    %89 = arith.maximumf %87, %88 : vector<32x8xf32>
    %cst_34 = arith.constant 0.000000e+00 : f32
    %90 = vector.broadcast %cst_34 : f32 to vector<4x8xf32>
    %91 = vector.extract_strided_slice %89 {offsets = [0, 0], sizes = [28, 8], strides = [1, 1]} : vector<32x8xf32> to vector<28x8xf32>
    %92 = tpu.concatenate %90, %91 in 0 : vector<4x8xf32>, vector<28x8xf32> -> vector<32x8xf32>
    %c4_i32 = arith.constant 4 : i32
    %93 = vector.broadcast %c4_i32 : i32 to vector<32x1xi32>
    %94 = arith.cmpi sge, %29, %93 : vector<32x1xi32>
    %cst_35 = arith.constant 0.000000e+00 : f32
    %95 = vector.shape_cast %94 : vector<32x1xi1> to vector<32x1xi1>
    %96 = vector.broadcast %95 : vector<32x1xi1> to vector<32x8xi1>
    %97 = vector.broadcast %cst_35 : f32 to vector<32x8xf32>
    %98 = arith.select %96, %92, %97 : vector<32x8xi1>, vector<32x8xf32>
    %cst_36 = arith.constant 0.000000e+00 : f32
    %99 = vector.broadcast %cst_36 : f32 to vector<2x8xf32>
    %100 = vector.extract_strided_slice %89 {offsets = [0, 0], sizes = [30, 8], strides = [1, 1]} : vector<32x8xf32> to vector<30x8xf32>
    %101 = tpu.concatenate %99, %100 in 0 : vector<2x8xf32>, vector<30x8xf32> -> vector<32x8xf32>
    %c2_i32_37 = arith.constant 2 : i32
    %102 = vector.broadcast %c2_i32_37 : i32 to vector<32x1xi32>
    %103 = arith.cmpi sge, %29, %102 : vector<32x1xi32>
    %cst_38 = arith.constant 0.000000e+00 : f32
    %104 = vector.shape_cast %103 : vector<32x1xi1> to vector<32x1xi1>
    %105 = vector.broadcast %104 : vector<32x1xi1> to vector<32x8xi1>
    %106 = vector.broadcast %cst_38 : f32 to vector<32x8xf32>
    %107 = arith.select %105, %101, %106 : vector<32x8xi1>, vector<32x8xf32>
    %108 = tpu.concatenate %98, %107, %89 in 1 : vector<32x8xf32>, vector<32x8xf32>, vector<32x8xf32> -> vector<32x24xf32>
    %c72 = arith.constant 72 : index
    %c0_39 = arith.constant 0 : index
    %109 = vector.load %arg2[%c72, %c0_39] : memref<176x128xf32, #tpu.memory_space<vmem>>, vector<24x8xf32>
    %cst_40 = arith.constant dense<0.000000e+00> : vector<32x8xf32>
    %110 = tpu.matmul %108, %109, %cst_40 {dimension_numbers = #tpu.dot_dimension_numbers<[1], [0], [0], [1], [0, 0, 1, 1], [], []>} : vector<32x24xf32>, vector<24x8xf32>, vector<32x8xf32> -> vector<32x8xf32>
    %c96 = arith.constant 96 : index
    %c0_41 = arith.constant 0 : index
    %111 = vector.load %arg2[%c96, %c0_41] : memref<176x128xf32, #tpu.memory_space<vmem>>, vector<1x8xf32>
    %112 = vector.broadcast %111 : vector<1x8xf32> to vector<32x8xf32>
    %113 = arith.addf %110, %112 : vector<32x8xf32>
    %cst_42 = arith.constant 0.000000e+00 : f32
    %114 = vector.broadcast %cst_42 : f32 to vector<32x8xf32>
    %115 = arith.maximumf %113, %114 : vector<32x8xf32>
    %cst_43 = arith.constant 0.000000e+00 : f32
    %116 = vector.broadcast %cst_43 : f32 to vector<4x8xf32>
    %117 = vector.extract_strided_slice %115 {offsets = [0, 0], sizes = [28, 8], strides = [1, 1]} : vector<32x8xf32> to vector<28x8xf32>
    %118 = tpu.concatenate %116, %117 in 0 : vector<4x8xf32>, vector<28x8xf32> -> vector<32x8xf32>
    %c4_i32_44 = arith.constant 4 : i32
    %119 = vector.broadcast %c4_i32_44 : i32 to vector<32x1xi32>
    %120 = arith.cmpi sge, %29, %119 : vector<32x1xi32>
    %cst_45 = arith.constant 0.000000e+00 : f32
    %121 = vector.shape_cast %120 : vector<32x1xi1> to vector<32x1xi1>
    %122 = vector.broadcast %121 : vector<32x1xi1> to vector<32x8xi1>
    %123 = vector.broadcast %cst_45 : f32 to vector<32x8xf32>
    %124 = arith.select %122, %118, %123 : vector<32x8xi1>, vector<32x8xf32>
    %cst_46 = arith.constant 0.000000e+00 : f32
    %125 = vector.broadcast %cst_46 : f32 to vector<2x8xf32>
    %126 = vector.extract_strided_slice %115 {offsets = [0, 0], sizes = [30, 8], strides = [1, 1]} : vector<32x8xf32> to vector<30x8xf32>
    %127 = tpu.concatenate %125, %126 in 0 : vector<2x8xf32>, vector<30x8xf32> -> vector<32x8xf32>
    %c2_i32_47 = arith.constant 2 : i32
    %128 = vector.broadcast %c2_i32_47 : i32 to vector<32x1xi32>
    %129 = arith.cmpi sge, %29, %128 : vector<32x1xi32>
    %cst_48 = arith.constant 0.000000e+00 : f32
    %130 = vector.shape_cast %129 : vector<32x1xi1> to vector<32x1xi1>
    %131 = vector.broadcast %130 : vector<32x1xi1> to vector<32x8xi1>
    %132 = vector.broadcast %cst_48 : f32 to vector<32x8xf32>
    %133 = arith.select %131, %127, %132 : vector<32x8xi1>, vector<32x8xf32>
    %134 = tpu.concatenate %124, %133, %115 in 1 : vector<32x8xf32>, vector<32x8xf32>, vector<32x8xf32> -> vector<32x24xf32>
    %c104 = arith.constant 104 : index
    %c0_49 = arith.constant 0 : index
    %135 = vector.load %arg2[%c104, %c0_49] : memref<176x128xf32, #tpu.memory_space<vmem>>, vector<24x8xf32>
    %cst_50 = arith.constant dense<0.000000e+00> : vector<32x8xf32>
    %136 = tpu.matmul %134, %135, %cst_50 {dimension_numbers = #tpu.dot_dimension_numbers<[1], [0], [0], [1], [0, 0, 1, 1], [], []>} : vector<32x24xf32>, vector<24x8xf32>, vector<32x8xf32> -> vector<32x8xf32>
    %c128 = arith.constant 128 : index
    %c0_51 = arith.constant 0 : index
    %137 = vector.load %arg2[%c128, %c0_51] : memref<176x128xf32, #tpu.memory_space<vmem>>, vector<1x8xf32>
    %138 = vector.broadcast %137 : vector<1x8xf32> to vector<32x8xf32>
    %139 = arith.addf %136, %138 : vector<32x8xf32>
    %cst_52 = arith.constant 0.000000e+00 : f32
    %140 = vector.broadcast %cst_52 : f32 to vector<32x8xf32>
    %141 = arith.maximumf %139, %140 : vector<32x8xf32>
    %142 = arith.addf %141, %89 : vector<32x8xf32>
    %cst_53 = arith.constant 0.000000e+00 : f32
    %143 = vector.broadcast %cst_53 : f32 to vector<32x8xf32>
    %144 = arith.maximumf %142, %143 : vector<32x8xf32>
    %c136 = arith.constant 136 : index
    %c0_54 = arith.constant 0 : index
    %145 = vector.load %arg2[%c136, %c0_54] : memref<176x128xf32, #tpu.memory_space<vmem>>, vector<8x3xf32>
    %cst_55 = arith.constant dense<0.000000e+00> : vector<32x3xf32>
    %146 = tpu.matmul %144, %145, %cst_55 {dimension_numbers = #tpu.dot_dimension_numbers<[1], [0], [0], [1], [0, 0, 1, 1], [], []>} : vector<32x8xf32>, vector<8x3xf32>, vector<32x3xf32> -> vector<32x3xf32>
    %c144 = arith.constant 144 : index
    %c0_56 = arith.constant 0 : index
    %147 = vector.load %arg2[%c144, %c0_56] : memref<176x128xf32, #tpu.memory_space<vmem>>, vector<1x3xf32>
    %148 = vector.broadcast %147 : vector<1x3xf32> to vector<32x3xf32>
    %149 = arith.addf %146, %148 : vector<32x3xf32>
    %150 = tpu.iota {dimensions = array<i32: 0>} : vector<3x3xi32>
    %151 = tpu.iota {dimensions = array<i32: 1>} : vector<3x3xi32>
    %152 = arith.cmpi eq, %150, %151 : vector<3x3xi32>
    %cst_57 = arith.constant 1.000000e+00 : f32
    %cst_58 = arith.constant 0.000000e+00 : f32
    %153 = vector.broadcast %cst_57 : f32 to vector<3x3xf32>
    %154 = vector.broadcast %cst_58 : f32 to vector<3x3xf32>
    %155 = arith.select %152, %153, %154 : vector<3x3xi1>, vector<3x3xf32>
    %cst_59 = arith.constant dense<0.000000e+00> : vector<3x32xf32>
    %156 = tpu.matmul %155, %149, %cst_59 {dimension_numbers = #tpu.dot_dimension_numbers<[1], [1], [0], [0], [0, 0, 1, 0], [], []>} : vector<3x3xf32>, vector<32x3xf32>, vector<3x32xf32> -> vector<3x32xf32>
    %c152 = arith.constant 152 : index
    %c0_60 = arith.constant 0 : index
    %157 = vector.load %arg2[%c152, %c0_60] : memref<176x128xf32, #tpu.memory_space<vmem>>, vector<16x1xf32>
    %c168 = arith.constant 168 : index
    %c0_61 = arith.constant 0 : index
    %158 = vector.load %arg2[%c168, %c0_61] : memref<176x128xf32, #tpu.memory_space<vmem>>, vector<1x1xf32>
    %159 = vector.extract_strided_slice %156 {offsets = [0, 0], sizes = [3, 16], strides = [1, 1]} : vector<3x32xf32> to vector<3x16xf32>
    %cst_62 = arith.constant dense<0.000000e+00> : vector<3x1xf32>
    %160 = tpu.matmul %159, %157, %cst_62 {dimension_numbers = #tpu.dot_dimension_numbers<[1], [0], [0], [1], [0, 0, 1, 1], [], []>} : vector<3x16xf32>, vector<16x1xf32>, vector<3x1xf32> -> vector<3x1xf32>
    %161 = vector.broadcast %158 : vector<1x1xf32> to vector<3x1xf32>
    %162 = arith.addf %160, %161 : vector<3x1xf32>
    %163 = vector.shape_cast %162 : vector<3x1xf32> to vector<1x3x1xf32>
    %164 = vector.extract_strided_slice %156 {offsets = [0, 16], sizes = [3, 16], strides = [1, 1]} : vector<3x32xf32> to vector<3x16xf32>
    %cst_63 = arith.constant dense<0.000000e+00> : vector<3x1xf32>
    %165 = tpu.matmul %164, %157, %cst_63 {dimension_numbers = #tpu.dot_dimension_numbers<[1], [0], [0], [1], [0, 0, 1, 1], [], []>} : vector<3x16xf32>, vector<16x1xf32>, vector<3x1xf32> -> vector<3x1xf32>
    %166 = vector.broadcast %158 : vector<1x1xf32> to vector<3x1xf32>
    %167 = arith.addf %165, %166 : vector<3x1xf32>
    %168 = vector.shape_cast %167 : vector<3x1xf32> to vector<1x3x1xf32>
    %169 = tpu.concatenate %163, %168 in 0 : vector<1x3x1xf32>, vector<1x3x1xf32> -> vector<2x3x1xf32>
    %c0_64 = arith.constant 0 : index
    %c0_65 = arith.constant 0 : index
    %c0_66 = arith.constant 0 : index
    %170 = vector.load %arg3[%c0_64, %c0_65, %c0_66] : memref<2x3x1xf32, #tpu.memory_space<vmem>>, vector<2x3x1xf32>
    tpu.vector_store %arg3[%c0_64, %c0_65, %c0_66], %169 {strides = array<i32>} : memref<2x3x1xf32, #tpu.memory_space<vmem>>, vector<2x3x1xf32>,
    return
  }
  func.func @transform_0(%arg0: i32) -> (i32, i32, i32) {
    %c0_i32 = arith.constant 0 : i32
    %c0_i32_0 = arith.constant 0 : i32
    %c0_i32_1 = arith.constant 0 : i32
    return %arg0, %c0_i32, %c0_i32_0 : i32, i32, i32
  }
  func.func @transform_1(%arg0: i32) -> (i32, i32) {
    %c0_i32 = arith.constant 0 : i32
    %c0_i32_0 = arith.constant 0 : i32
    %c0_i32_1 = arith.constant 0 : i32
    return %c0_i32, %c0_i32_0 : i32, i32
  }
  func.func @transform_2(%arg0: i32) -> (i32, i32, i32) {
    %c0_i32 = arith.constant 0 : i32
    %c0_i32_0 = arith.constant 0 : i32
    %c0_i32_1 = arith.constant 0 : i32
    return %arg0, %c0_i32, %c0_i32_0 : i32, i32, i32
  }
}

</mosaic_0001>

<llo_original>
// kernel: tcn_block_fading_forward.1
$region0: #{tcn_block_fading_forward.1}
  #allocation0 [shape = 'u32[]', space=smem, size = 0x4, offset = 0x4, fixed_abs, tag = 'smem constant byte address 0x4 - core index']
  #allocation1 [shape = 'u32[144,128]{1,0:T(1,128)}', space=vmem, size = 0x12000, scoped, tag = 'internal scratch']
  %s0 = inlined_call_operand.hbm [shape: f32[2,4,16], index: 0, kind: input, shape index: {}]
  %s1 = inlined_call_operand.hbm [shape: f32[176,128], index: 1, kind: input, shape index: {}]
  %s2 = inlined_call_operand.vmem [shape: f32[2,3,1], index: 2, kind: output, shape index: {}]
  %s3 = sld [smem:[#allocation0]]
  $region26: #{tcn_block_fading_forward.1} parent=0
    _
  %s5 = ssub.s32 1, %s3
  %s6 = scalar_select 0, %s5, %s3
  $region1: #{tcn_block_fading_forward.1} parent=0
    #allocation2 [shape = 'u8[4096]{0}', space=vmem, size = 0x1000, scoped, tag = 'input window, operand 0, single buffered']
    #allocation3 [shape = 's32[1]{0}', space=sflag, size = 0x4, scoped, tag = 'scoped memory for tcn_block_fading_forward.1']
    #allocation4 [shape = 'u8[90112]{0}', space=vmem, size = 0x16000, scoped, tag = 'input window, operand 1, single buffered']
    #allocation5 [shape = 's32[1]{0}', space=sflag, size = 0x4, scoped, tag = 'scoped memory for tcn_block_fading_forward.1']
    %7 = vsyncpa [#allocation3], 0
    %8 = vsyncpa [#allocation5], 0
    // Predicated region
    $region2: #{tcn_block_fading_forward.1} parent=1 // pred_check
      _
    $region3: #{tcn_block_fading_forward.1} parent=1 // pred_check_branch
      %10 = sbr.rel (0) target = $region5
    $region4: #{tcn_block_fading_forward.1} parent=1 // pred_region
      %s12 = ssub.s32 128, 128
      %13 = vsyncadd [#allocation3], %s12
      %s14 = sshll.u32 [#allocation2], 4
      %s15 = int_to_ptr.vmem [resolvable:$true] %s14
      %20 = dma.hbm_to_vmem [thread:$0]  %s0, 128, %s15, [#allocation3], 64, 64, 4
    $region5: #{tcn_block_fading_forward.1} parent=1 // pred_fallthru
      _
    // Predicated region
    $region6: #{tcn_block_fading_forward.1} parent=1 // pred_check
      _
    $region7: #{tcn_block_fading_forward.1} parent=1 // pred_check_branch
      %22 = sbr.rel (0) target = $region9
    $region8: #{tcn_block_fading_forward.1} parent=1 // pred_region
      %s24 = ssub.s32 2816, 2816
      %25 = vsyncadd [#allocation5], %s24
      %s26 = sshll.u32 [#allocation4], 4
      %s27 = int_to_ptr.vmem [resolvable:$true] %s26
      %32 = dma.hbm_to_vmem [thread:$0]  %s1, 2816, %s27, [#allocation5], 128, 128, 8
    $region9: #{tcn_block_fading_forward.1} parent=1 // pred_fallthru
      _
    // Predicated region
    $region10: #{tcn_block_fading_forward.1} parent=1 // pred_check
      _
    $region11: #{tcn_block_fading_forward.1} parent=1 // pred_check_branch
      %34 = sbr.rel (0) target = $region13
    $region12: #{tcn_block_fading_forward.1} parent=1 // pred_region
      %35 = dma.done [#allocation3], 128
    $region13: #{tcn_block_fading_forward.1} parent=1 // pred_fallthru
      _
    // Predicated region
    $region14: #{tcn_block_fading_forward.1} parent=1 // pred_check
      _
    $region15: #{tcn_block_fading_forward.1} parent=1 // pred_check_branch
      %37 = sbr.rel (0) target = $region17
    $region16: #{tcn_block_fading_forward.1} parent=1 // pred_region
      %38 = dma.done [#allocation5], 2816
    $region17: #{tcn_block_fading_forward.1} parent=1 // pred_fallthru
      _
    %v39 = vlaneseq
    %v40 = vshrl.u32 %v39, 7
    %v41 = vadd.s32 %v40, 8
    %v42 = vlaneseq
    %v43 = vand.u32 %v42, 127
    %vm44 = vcmp.eq.s32.totalorder %v40, %v43
    %vm45 = vcmp.eq.s32.totalorder %v41, %v43
    %v46 = vsel %vm44, 1.0, 0.0
    %v47 = vsel %vm45, 1.0, 0.0
    %v48 = vld [vmem:[#allocation2] sm:$0xf]
    %vm49 = vcmask 130048
    %v51 = vsel %vm49, %v46, 0
    %v54 = vsel %vm49, %v47, 0
    %v57 = vsel %vm49, %v48, 0
    %59 = vmatprep.subr.mxu0 0.0
    %60 = vmatpush1.xpose.msra.mxu0 %v57
    %61 = vmatprep.subr.mxu0 0.0
    %62 = vmatpush1.xpose.msra.mxu0 0.0
    %63 = vmatprep.subr.mxu0 0.0
    %64 = vmatpush1.xpose.msra.mxu0 0.0
    %65 = vmatprep.subr.mxu0 0.0
    %66 = vmatpush1.xpose.msra.mxu0 0.0
    %67 = vmatprep.subr.mxu0 0.0
    %68 = vmatpush1.xpose.msra.mxu0 0.0
    %69 = vmatprep.subr.mxu0 0.0
    %70 = vmatpush1.xpose.msra.mxu0 0.0
    %71 = vmatprep.subr.mxu0 0.0
    %72 = vmatpush1.xpose.msra.mxu0 0.0
    %73 = vmatprep.subr.mxu0 0.0
    %74 = vmatpush1.xpose.msra.mxu0 0.0
    %75 = vmatprep.subr.mxu0 0.0
    %76 = vmatpush1.xpose.msra.mxu0 0.0
    %77 = vmatprep.subr.mxu0 0.0
    %78 = vmatpush1.xpose.msra.mxu0 0.0
    %79 = vmatprep.subr.mxu0 0.0
    %80 = vmatpush1.xpose.msra.mxu0 0.0
    %81 = vmatprep.subr.mxu0 0.0
    %82 = vmatpush1.xpose.msra.mxu0 0.0
    %83 = vmatprep.subr.mxu0 0.0
    %84 = vmatpush1.xpose.msra.mxu0 0.0
    %85 = vmatprep.subr.mxu0 0.0
    %86 = vmatpush1.xpose.msra.mxu0 0.0
    %87 = vmatprep.subr.mxu0 0.0
    %88 = vmatpush1.xpose.msra.mxu0 0.0
    %89 = vmatprep.subr.mxu0 0.0
    %90 = vmatpush1.xpose.msra.mxu0 0.0
    %91 = vmatprep.subr.mxu0 0.0
    %92 = vmatpush1.xpose.msra.mxu0 0.0
    %93 = vmatprep.subr.mxu0 0.0
    %94 = vmatpush1.xpose.msra.mxu0 0.0
    %95 = vmatprep.subr.mxu0 0.0
    %96 = vmatpush1.xpose.msra.mxu0 0.0
    %97 = vmatprep.subr.mxu0 0.0
    %98 = vmatpush1.xpose.msra.mxu0 0.0
    %99 = vmatprep.subr.mxu0 0.0
    %100 = vmatpush1.xpose.msra.mxu0 0.0
    %101 = vmatprep.subr.mxu0 0.0
    %102 = vmatpush1.xpose.msra.mxu0 0.0
    %103 = vmatprep.subr.mxu0 0.0
    %104 = vmatpush1.xpose.msra.mxu0 0.0
    %105 = vmatprep.subr.mxu0 0.0
    %106 = vmatpush1.xpose.msra.mxu0 0.0
    %107 = vmatprep.subr.mxu0 0.0
    %108 = vmatpush1.xpose.msra.mxu0 0.0
    %109 = vmatprep.subr.mxu0 0.0
    %110 = vmatpush1.xpose.msra.mxu0 0.0
    %111 = vmatprep.subr.mxu0 0.0
    %112 = vmatpush1.xpose.msra.mxu0 0.0
    %113 = vmatprep.subr.mxu0 0.0
    %114 = vmatpush1.xpose.msra.mxu0 0.0
    %115 = vmatprep.subr.mxu0 0.0
    %116 = vmatpush1.xpose.msra.mxu0 0.0
    %117 = vmatprep.subr.mxu0 0.0
    %118 = vmatpush1.xpose.msra.mxu0 0.0
    %119 = vmatprep.subr.mxu0 0.0
    %120 = vmatpush1.xpose.msra.mxu0 0.0
    %121 = vmatprep.subr.mxu0 0.0
    %122 = vmatpush1.xpose.msra.mxu0 0.0
    %123 = vmatprep.mubr.f32.mxu0 0.0
    %124 = vmatmul.mubr.f32.gmra.mrb[0].mxu0 %v51
    %v125 = vpop.f32.mrb[0].mxu0
    %v126 = vadd.f32 0.0, %v125
    %v127 = vpop.f32.mrb[0].mxu0
    %128 = vmatprep.mubr.f32.mxu0 0.0
    %129 = vmatmul.mubr.f32.gmra.mrb[0].mxu0 %v54
    %v130 = vpop.f32.mrb[0].mxu0
    %v131 = vadd.f32 0.0, %v130
    %v132 = vpop.f32.mrb[0].mxu0
    %133 = vdwg.mxu0
    %s134 = scalar_lea.vmem [#allocation2], 4
    %v135 = vld [vmem:[%s134] sm:$0xf]
    %v137 = vsel %vm49, %v135, 0
    %139 = vmatprep.subr.mxu0 0.0
    %140 = vmatpush1.xpose.msra.mxu0 %v137
    %141 = vmatprep.subr.mxu0 0.0
    %142 = vmatpush1.xpose.msra.mxu0 0.0
    %143 = vmatprep.subr.mxu0 0.0
    %144 = vmatpush1.xpose.msra.mxu0 0.0
    %145 = vmatprep.subr.mxu0 0.0
    %146 = vmatpush1.xpose.msra.mxu0 0.0
    %147 = vmatprep.subr.mxu0 0.0
    %148 = vmatpush1.xpose.msra.mxu0 0.0
    %149 = vmatprep.subr.mxu0 0.0
    %150 = vmatpush1.xpose.msra.mxu0 0.0
    %151 = vmatprep.subr.mxu0 0.0
    %152 = vmatpush1.xpose.msra.mxu0 0.0
    %153 = vmatprep.subr.mxu0 0.0
    %154 = vmatpush1.xpose.msra.mxu0 0.0
    %155 = vmatprep.subr.mxu0 0.0
    %156 = vmatpush1.xpose.msra.mxu0 0.0
    %157 = vmatprep.subr.mxu0 0.0
    %158 = vmatpush1.xpose.msra.mxu0 0.0
    %159 = vmatprep.subr.mxu0 0.0
    %160 = vmatpush1.xpose.msra.mxu0 0.0
    %161 = vmatprep.subr.mxu0 0.0
    %162 = vmatpush1.xpose.msra.mxu0 0.0
    %163 = vmatprep.subr.mxu0 0.0
    %164 = vmatpush1.xpose.msra.mxu0 0.0
    %165 = vmatprep.subr.mxu0 0.0
    %166 = vmatpush1.xpose.msra.mxu0 0.0
    %167 = vmatprep.subr.mxu0 0.0
    %168 = vmatpush1.xpose.msra.mxu0 0.0
    %169 = vmatprep.subr.mxu0 0.0
    %170 = vmatpush1.xpose.msra.mxu0 0.0
    %171 = vmatprep.subr.mxu0 0.0
    %172 = vmatpush1.xpose.msra.mxu0 0.0
    %173 = vmatprep.subr.mxu0 0.0
    %174 = vmatpush1.xpose.msra.mxu0 0.0
    %175 = vmatprep.subr.mxu0 0.0
    %176 = vmatpush1.xpose.msra.mxu0 0.0
    %177 = vmatprep.subr.mxu0 0.0
    %178 = vmatpush1.xpose.msra.mxu0 0.0
    %179 = vmatprep.subr.mxu0 0.0
    %180 = vmatpush1.xpose.msra.mxu0 0.0
    %181 = vmatprep.subr.mxu0 0.0
    %182 = vmatpush1.xpose.msra.mxu0 0.0
    %183 = vmatprep.subr.mxu0 0.0
    %184 = vmatpush1.xpose.msra.mxu0 0.0
    %185 = vmatprep.subr.mxu0 0.0
    %186 = vmatpush1.xpose.msra.mxu0 0.0
    %187 = vmatprep.subr.mxu0 0.0
    %188 = vmatpush1.xpose.msra.mxu0 0.0
    %189 = vmatprep.subr.mxu0 0.0
    %190 = vmatpush1.xpose.msra.mxu0 0.0
    %191 = vmatprep.subr.mxu0 0.0
    %192 = vmatpush1.xpose.msra.mxu0 0.0
    %193 = vmatprep.subr.mxu0 0.0
    %194 = vmatpush1.xpose.msra.mxu0 0.0
    %195 = vmatprep.subr.mxu0 0.0
    %196 = vmatpush1.xpose.msra.mxu0 0.0
    %197 = vmatprep.subr.mxu0 0.0
    %198 = vmatpush1.xpose.msra.mxu0 0.0
    %199 = vmatprep.subr.mxu0 0.0
    %200 = vmatpush1.xpose.msra.mxu0 0.0
    %201 = vmatprep.subr.mxu0 0.0
    %202 = vmatpush1.xpose.msra.mxu0 0.0
    %203 = vmatprep.mubr.f32.mxu0 0.0
    %204 = vmatmul.mubr.f32.gmra.mrb[0].mxu0 %v51
    %v205 = vpop.f32.mrb[0].mxu0
    %v206 = vadd.f32 0.0, %v205
    %v207 = vpop.f32.mrb[0].mxu0
    %208 = vmatprep.mubr.f32.mxu0 0.0
    %209 = vmatmul.mubr.f32.gmra.mrb[0].mxu0 %v54
    %v210 = vpop.f32.mrb[0].mxu0
    %v211 = vadd.f32 0.0, %v210
    %v212 = vpop.f32.mrb[0].mxu0
    %213 = vdwg.mxu0
    %v214 = vadd.s32 %v40, 16
    %v215 = vadd.s32 %v40, 24
    %vm216 = vcmp.lt.s32.totalorder %v40, 0
    %v217 = vsub.s32 0, %v40
    %v218 = vsel %vm216, %v217, %v40
    %v219 = vshrl.u32 %v218, 4
    %v220 = vand.u32 %v218, 15
    %v221 = vsub.s32 0, %v220
    %v222 = vsel %vm216, %v221, %v220
    %vm223 = vcmp.lt.s32.totalorder %v41, 0
    %v224 = vsub.s32 0, %v41
    %v225 = vsel %vm223, %v224, %v41
    %v226 = vshrl.u32 %v225, 4
    %v227 = vand.u32 %v225, 15
    %v228 = vsub.s32 0, %v227
    %v229 = vsel %vm223, %v228, %v227
    %vm230 = vcmp.lt.s32.totalorder %v214, 0
    %v231 = vsub.s32 0, %v214
    %v232 = vsel %vm230, %v231, %v214
    %v233 = vshrl.u32 %v232, 4
    %v234 = vand.u32 %v232, 15
    %v235 = vsub.s32 0, %v234
    %v236 = vsel %vm230, %v235, %v234
    %vm237 = vcmp.lt.s32.totalorder %v215, 0
    %v238 = vsub.s32 0, %v215
    %v239 = vsel %vm237, %v238, %v215
    %v240 = vshrl.u32 %v239, 4
    %v241 = vand.u32 %v239, 15
    %v242 = vsub.s32 0, %v241
    %v243 = vsel %vm237, %v242, %v241
    %vm244 = vcmp.ne.s32.totalorder %v222, 0
    %vm245 = vcmp.ne.s32.totalorder %v229, 0
    %vm246 = vcmp.ne.s32.totalorder %v236, 0
    %vm247 = vcmp.ne.s32.totalorder %v243, 0
    %vm248 = vcmp.lt.s32.totalorder %v222, 0
    %vm249 = vcmp.lt.s32.totalorder %v229, 0
    %vm250 = vcmp.lt.s32.totalorder %v236, 0
    %vm251 = vcmp.lt.s32.totalorder %v243, 0
    %vm252 = vmand %vm248, %vm244
    %vm253 = vmand %vm249, %vm245
    %vm254 = vmand %vm250, %vm246
    %vm255 = vmand %vm251, %vm247
    %v256 = vadd.s32 %v222, 16
    %v257 = vadd.s32 %v229, 16
    %v258 = vadd.s32 %v236, 16
    %v259 = vadd.s32 %v243, 16
    %v260 = vsel %vm252, %v256, %v222
    %v261 = vsel %vm253, %v257, %v229
    %v262 = vsel %vm254, %v258, %v236
    %v263 = vsel %vm255, %v259, %v243
    %vm268 = vcmask 1041408
    %v269 = vrot.slane %v126, 6
    %v270 = vrot.slane %v131, 6
    %v271 = vsel %vm268, %v269, %v270
    %v272 = vrot.slane %v206, 6
    %v273 = vsel %vm268, %v270, %v272
    %v274 = vrot.slane %v211, 6
    %v275 = vsel %vm268, %v272, %v274
    %v280 = vsel %vm268, 0.0, %v269
    %vm281 = vcmp.ge.s32.totalorder %v260, 2
    %vm282 = vcmp.ge.s32.totalorder %v261, 2
    %vm283 = vcmp.ge.s32.totalorder %v262, 2
    %vm284 = vcmp.ge.s32.totalorder %v263, 2
    %v285 = vsel %vm281, 1, 0
    %v286 = vsel %vm282, 1, 0
    %v287 = vsel %vm283, 1, 0
    %v288 = vsel %vm284, 1, 0
    %vm289 = vcmp.eq.s32.totalorder %v285, 1
    %vm290 = vcmp.eq.s32.totalorder %v286, 1
    %vm291 = vcmp.eq.s32.totalorder %v287, 1
    %vm292 = vcmp.eq.s32.totalorder %v288, 1
    %v293 = vsel %vm289, %v280, 0.0
    %v294 = vsel %vm290, %v271, 0.0
    %v295 = vsel %vm291, %v273, 0.0
    %v296 = vsel %vm292, %v275, 0.0
    %vm297 = vcmask 1040384
    %v298 = vrot.slane %v126, 7
    %v299 = vrot.slane %v131, 7
    %v300 = vsel %vm297, %v298, %v299
    %v301 = vrot.slane %v206, 7
    %v302 = vsel %vm297, %v299, %v301
    %v303 = vrot.slane %v211, 7
    %v304 = vsel %vm297, %v301, %v303
    %v309 = vsel %vm297, 0.0, %v298
    %vm310 = vcmp.ge.s32.totalorder %v260, 1
    %vm311 = vcmp.ge.s32.totalorder %v261, 1
    %vm312 = vcmp.ge.s32.totalorder %v262, 1
    %vm313 = vcmp.ge.s32.totalorder %v263, 1
    %v314 = vsel %vm310, 1, 0
    %v315 = vsel %vm311, 1, 0
    %v316 = vsel %vm312, 1, 0
    %v317 = vsel %vm313, 1, 0
    %vm318 = vcmp.eq.s32.totalorder %v314, 1
    %vm319 = vcmp.eq.s32.totalorder %v315, 1
    %vm320 = vcmp.eq.s32.totalorder %v316, 1
    %vm321 = vcmp.eq.s32.totalorder %v317, 1
    %v322 = vsel %vm318, %v309, 0.0
    %v323 = vsel %vm319, %v300, 0.0
    %v324 = vsel %vm320, %v302, 0.0
    %v325 = vsel %vm321, %v304, 0.0
    %330 = vrot.lane.b32.xlu0 %v322, 4
    %v331 = vpop.permute.xlu0 %330
    %332 = vrot.lane.b32.xlu0 %v323, 4
    %v333 = vpop.permute.xlu0 %332
    %334 = vrot.lane.b32.xlu0 %v324, 4
    %v335 = vpop.permute.xlu0 %334
    %336 = vrot.lane.b32.xlu0 %v325, 4
    %v337 = vpop.permute.xlu0 %336
    %342 = vrot.lane.b32.xlu0 %v126, 8
    %v343 = vpop.permute.xlu0 %342
    %344 = vrot.lane.b32.xlu0 %v131, 8
    %v345 = vpop.permute.xlu0 %344
    %346 = vrot.lane.b32.xlu0 %v206, 8
    %v347 = vpop.permute.xlu0 %346
    %348 = vrot.lane.b32.xlu0 %v211, 8
    %v349 = vpop.permute.xlu0 %348
    %vm354 = vcmask 31744
    %v355 = vsel %vm354, %v293, %v331
    %v356 = vsel %vm354, %v294, %v333
    %v357 = vsel %vm354, %v295, %v335
    %v358 = vsel %vm354, %v296, %v337
    %vm359 = vcmask 64512
    %v360 = vsel %vm359, %v355, %v343
    %v361 = vsel %vm359, %v356, %v345
    %v362 = vsel %vm359, %v357, %v347
    %v363 = vsel %vm359, %v358, %v349
    %v364 = vld [vmem:[#allocation4] sm:$0xff]
    %v365 = vld [vmem:[#allocation4 + $0x8] sm:$0xf]
    %v366 = vld [vmem:[#allocation4 + $0x10] sm:$0x1]
    %v367 = vlaneseq
    %v368 = vshrl.u32 %v367, 7
    %v369 = vsub.s32 0, %v368
    %v370 = vrot.slane %v366, %v369
    %vm371 = vcmask 97280
    %v373 = vsel %vm371, %v360, 0
    %v376 = vsel %vm371, %v361, 0
    %v379 = vsel %vm371, %v362, 0
    %v382 = vsel %vm371, %v363, 0
    %vm384 = vcmask 1043456
    %v386 = vsel %vm384, %v365, 0
    %388 = vmatprep.subr.mxu0 0.0
    %389 = vmatpush1.msra.mxu0 %v364
    %390 = vmatprep.subr.mxu0 0.0
    %391 = vmatpush1.msra.mxu0 %v386
    %392 = vmatprep.subr.mxu0 0.0
    %393 = vmatpush1.msra.mxu0 0.0
    %394 = vmatprep.subr.mxu0 0.0
    %395 = vmatpush1.msra.mxu0 0.0
    %396 = vmatprep.subr.mxu0 0.0
    %397 = vmatpush1.msra.mxu0 0.0
    %398 = vmatprep.subr.mxu0 0.0
    %399 = vmatpush1.msra.mxu0 0.0
    %400 = vmatprep.subr.mxu0 0.0
    %401 = vmatpush1.msra.mxu0 0.0
    %402 = vmatprep.subr.mxu0 0.0
    %403 = vmatpush1.msra.mxu0 0.0
    %404 = vmatprep.subr.mxu0 0.0
    %405 = vmatpush1.msra.mxu0 0.0
    %406 = vmatprep.subr.mxu0 0.0
    %407 = vmatpush1.msra.mxu0 0.0
    %408 = vmatprep.subr.mxu0 0.0
    %409 = vmatpush1.msra.mxu0 0.0
    %410 = vmatprep.subr.mxu0 0.0
    %411 = vmatpush1.msra.mxu0 0.0
    %412 = vmatprep.subr.mxu0 0.0
    %413 = vmatpush1.msra.mxu0 0.0
    %414 = vmatprep.subr.mxu0 0.0
    %415 = vmatpush1.msra.mxu0 0.0
    %416 = vmatprep.subr.mxu0 0.0
    %417 = vmatpush1.msra.mxu0 0.0
    %418 = vmatprep.subr.mxu0 0.0
    %419 = vmatpush1.msra.mxu0 0.0
    %420 = vmatprep.subr.mxu0 0.0
    %421 = vmatpush1.msra.mxu0 0.0
    %422 = vmatprep.subr.mxu0 0.0
    %423 = vmatpush1.msra.mxu0 0.0
    %424 = vmatprep.subr.mxu0 0.0
    %425 = vmatpush1.msra.mxu0 0.0
    %426 = vmatprep.subr.mxu0 0.0
    %427 = vmatpush1.msra.mxu0 0.0
    %428 = vmatprep.subr.mxu0 0.0
    %429 = vmatpush1.msra.mxu0 0.0
    %430 = vmatprep.subr.mxu0 0.0
    %431 = vmatpush1.msra.mxu0 0.0
    %432 = vmatprep.subr.mxu0 0.0
    %433 = vmatpush1.msra.mxu0 0.0
    %434 = vmatprep.subr.mxu0 0.0
    %435 = vmatpush1.msra.mxu0 0.0
    %436 = vmatprep.subr.mxu0 0.0
    %437 = vmatpush1.msra.mxu0 0.0
    %438 = vmatprep.subr.mxu0 0.0
    %439 = vmatpush1.msra.mxu0 0.0
    %440 = vmatprep.subr.mxu0 0.0
    %441 = vmatpush1.msra.mxu0 0.0
    %442 = vmatprep.subr.mxu0 0.0
    %443 = vmatpush1.msra.mxu0 0.0
    %444 = vmatprep.subr.mxu0 0.0
    %445 = vmatpush1.msra.mxu0 0.0
    %446 = vmatprep.subr.mxu0 0.0
    %447 = vmatpush1.msra.mxu0 0.0
    %448 = vmatprep.subr.mxu0 0.0
    %449 = vmatpush1.msra.mxu0 0.0
    %450 = vmatprep.subr.mxu0 0.0
    %451 = vmatpush1.msra.mxu0 0.0
    %452 = vmatprep.mubr.f32.mxu0 0.0
    %453 = vmatmul.mubr.f32.gmra.mrb[0].mxu0 %v373
    %v454 = vpop.f32.mrb[0].mxu0
    %v455 = vadd.f32 %v370, %v454
    %v456 = vpop.f32.mrb[0].mxu0
    %457 = vmatprep.mubr.f32.mxu0 0.0
    %458 = vmatmul.mubr.f32.gmra.mrb[0].mxu0 %v376
    %v459 = vpop.f32.mrb[0].mxu0
    %v460 = vadd.f32 %v370, %v459
    %v461 = vpop.f32.mrb[0].mxu0
    %462 = vmatprep.mubr.f32.mxu0 0.0
    %463 = vmatmul.mubr.f32.gmra.mrb[0].mxu0 %v379
    %v464 = vpop.f32.mrb[0].mxu0
    %v465 = vadd.f32 %v370, %v464
    %v466 = vpop.f32.mrb[0].mxu0
    %467 = vmatprep.mubr.f32.mxu0 0.0
    %468 = vmatmul.mubr.f32.gmra.mrb[0].mxu0 %v382
    %v469 = vpop.f32.mrb[0].mxu0
    %v470 = vadd.f32 %v370, %v469
    %v471 = vpop.f32.mrb[0].mxu0
    %472 = vdwg.mxu0
    %v473 = vmax.f32 %v455, 0.0
    %v474 = vmax.f32 %v460, 0.0
    %v475 = vmax.f32 %v465, 0.0
    %v476 = vmax.f32 %v470, 0.0
    %v481 = vrot.slane %v473, 6
    %v482 = vrot.slane %v474, 6
    %v483 = vsel %vm268, %v481, %v482
    %v484 = vrot.slane %v475, 6
    %v485 = vsel %vm268, %v482, %v484
    %v486 = vrot.slane %v476, 6
    %v487 = vsel %vm268, %v484, %v486
    %v492 = vsel %vm268, 0.0, %v481
    %v493 = vsel %vm289, %v492, 0.0
    %v494 = vsel %vm290, %v483, 0.0
    %v495 = vsel %vm291, %v485, 0.0
    %v496 = vsel %vm292, %v487, 0.0
    %v497 = vrot.slane %v473, 7
    %v498 = vrot.slane %v474, 7
    %v499 = vsel %vm297, %v497, %v498
    %v500 = vrot.slane %v475, 7
    %v501 = vsel %vm297, %v498, %v500
    %v502 = vrot.slane %v476, 7
    %v503 = vsel %vm297, %v500, %v502
    %v508 = vsel %vm297, 0.0, %v497
    %v509 = vsel %vm318, %v508, 0.0
    %v510 = vsel %vm319, %v499, 0.0
    %v511 = vsel %vm320, %v501, 0.0
    %v512 = vsel %vm321, %v503, 0.0
    %517 = vrot.lane.b32.xlu0 %v509, 8
    %v518 = vpop.permute.xlu0 %517
    %519 = vrot.lane.b32.xlu0 %v510, 8
    %v520 = vpop.permute.xlu0 %519
    %521 = vrot.lane.b32.xlu0 %v511, 8
    %v522 = vpop.permute.xlu0 %521
    %523 = vrot.lane.b32.xlu0 %v512, 8
    %v524 = vpop.permute.xlu0 %523
    %529 = vrot.lane.b32.xlu0 %v473, 16
    %v530 = vpop.permute.xlu0 %529
    %531 = vrot.lane.b32.xlu0 %v474, 16
    %v532 = vpop.permute.xlu0 %531
    %533 = vrot.lane.b32.xlu0 %v475, 16
    %v534 = vpop.permute.xlu0 %533
    %535 = vrot.lane.b32.xlu0 %v476, 16
    %v536 = vpop.permute.xlu0 %535
    %v541 = vsel %vm359, %v493, %v518
    %v542 = vsel %vm359, %v494, %v520
    %v543 = vsel %vm359, %v495, %v522
    %v544 = vsel %vm359, %v496, %v524
    %v545 = vsel %vm49, %v541, %v530
    %v546 = vsel %vm49, %v542, %v532
    %v547 = vsel %vm49, %v543, %v534
    %v548 = vsel %vm49, %v544, %v536
    %v549 = vld [vmem:[#allocation4 + $0x18] sm:$0xff]
    %v550 = vld [vmem:[#allocation4 + $0x20] sm:$0xff]
    %v551 = vld [vmem:[#allocation4 + $0x28] sm:$0xff]
    %v552 = vld [vmem:[#allocation4 + $0x30] sm:$0x1]
    %v553 = vlaneseq
    %v554 = vshrl.u32 %v553, 7
    %v555 = vsub.s32 0, %v554
    %v556 = vrot.slane %v552, %v555
    %vm557 = vcmask 195584
    %v559 = vsel %vm557, %v545, 0
    %v562 = vsel %vm557, %v546, 0
    %v565 = vsel %vm557, %v547, 0
    %v568 = vsel %vm557, %v548, 0
    %570 = vmatprep.subr.mxu0 0.0
    %571 = vmatpush1.msra.mxu0 %v549
    %572 = vmatprep.subr.mxu0 0.0
    %573 = vmatpush1.msra.mxu0 %v550
    %574 = vmatprep.subr.mxu0 0.0
    %575 = vmatpush1.msra.mxu0 %v551
    %576 = vmatprep.subr.mxu0 0.0
    %577 = vmatpush1.msra.mxu0 0.0
    %578 = vmatprep.subr.mxu0 0.0
    %579 = vmatpush1.msra.mxu0 0.0
    %580 = vmatprep.subr.mxu0 0.0
    %581 = vmatpush1.msra.mxu0 0.0
    %582 = vmatprep.subr.mxu0 0.0
    %583 = vmatpush1.msra.mxu0 0.0
    %584 = vmatprep.subr.mxu0 0.0
    %585 = vmatpush1.msra.mxu0 0.0
    %586 = vmatprep.subr.mxu0 0.0
    %587 = vmatpush1.msra.mxu0 0.0
    %588 = vmatprep.subr.mxu0 0.0
    %589 = vmatpush1.msra.mxu0 0.0
    %590 = vmatprep.subr.mxu0 0.0
    %591 = vmatpush1.msra.mxu0 0.0
    %592 = vmatprep.subr.mxu0 0.0
    %593 = vmatpush1.msra.mxu0 0.0
    %594 = vmatprep.subr.mxu0 0.0
    %595 = vmatpush1.msra.mxu0 0.0
    %596 = vmatprep.subr.mxu0 0.0
    %597 = vmatpush1.msra.mxu0 0.0
    %598 = vmatprep.subr.mxu0 0.0
    %599 = vmatpush1.msra.mxu0 0.0
    %600 = vmatprep.subr.mxu0 0.0
    %601 = vmatpush1.msra.mxu0 0.0
    %602 = vmatprep.subr.mxu0 0.0
    %603 = vmatpush1.msra.mxu0 0.0
    %604 = vmatprep.subr.mxu0 0.0
    %605 = vmatpush1.msra.mxu0 0.0
    %606 = vmatprep.subr.mxu0 0.0
    %607 = vmatpush1.msra.mxu0 0.0
    %608 = vmatprep.subr.mxu0 0.0
    %609 = vmatpush1.msra.mxu0 0.0
    %610 = vmatprep.subr.mxu0 0.0
    %611 = vmatpush1.msra.mxu0 0.0
    %612 = vmatprep.subr.mxu0 0.0
    %613 = vmatpush1.msra.mxu0 0.0
    %614 = vmatprep.subr.mxu0 0.0
    %615 = vmatpush1.msra.mxu0 0.0
    %616 = vmatprep.subr.mxu0 0.0
    %617 = vmatpush1.msra.mxu0 0.0
    %618 = vmatprep.subr.mxu0 0.0
    %619 = vmatpush1.msra.mxu0 0.0
    %620 = vmatprep.subr.mxu0 0.0
    %621 = vmatpush1.msra.mxu0 0.0
    %622 = vmatprep.subr.mxu0 0.0
    %623 = vmatpush1.msra.mxu0 0.0
    %624 = vmatprep.subr.mxu0 0.0
    %625 = vmatpush1.msra.mxu0 0.0
    %626 = vmatprep.subr.mxu0 0.0
    %627 = vmatpush1.msra.mxu0 0.0
    %628 = vmatprep.subr.mxu0 0.0
    %629 = vmatpush1.msra.mxu0 0.0
    %630 = vmatprep.subr.mxu0 0.0
    %631 = vmatpush1.msra.mxu0 0.0
    %632 = vmatprep.subr.mxu0 0.0
    %633 = vmatpush1.msra.mxu0 0.0
    %634 = vmatprep.mubr.f32.mxu0 0.0
    %635 = vmatmul.mubr.f32.gmra.mrb[0].mxu0 %v559
    %v636 = vpop.f32.mrb[0].mxu0
    %v637 = vadd.f32 %v556, %v636
    %v638 = vpop.f32.mrb[0].mxu0
    %639 = vmatprep.mubr.f32.mxu0 0.0
    %640 = vmatmul.mubr.f32.gmra.mrb[0].mxu0 %v562
    %v641 = vpop.f32.mrb[0].mxu0
    %v642 = vadd.f32 %v556, %v641
    %v643 = vpop.f32.mrb[0].mxu0
    %644 = vmatprep.mubr.f32.mxu0 0.0
    %645 = vmatmul.mubr.f32.gmra.mrb[0].mxu0 %v565
    %v646 = vpop.f32.mrb[0].mxu0
    %v647 = vadd.f32 %v556, %v646
    %v648 = vpop.f32.mrb[0].mxu0
    %649 = vmatprep.mubr.f32.mxu0 0.0
    %650 = vmatmul.mubr.f32.gmra.mrb[0].mxu0 %v568
    %v651 = vpop.f32.mrb[0].mxu0
    %v652 = vadd.f32 %v556, %v651
    %v653 = vpop.f32.mrb[0].mxu0
    %654 = vdwg.mxu0
    %v655 = vmax.f32 %v637, 0.0
    %v656 = vmax.f32 %v642, 0.0
    %v657 = vmax.f32 %v647, 0.0
    %v658 = vmax.f32 %v652, 0.0
    %v659 = vld [vmem:[#allocation4 + $0x38] sm:$0xf]
    %v660 = vld [vmem:[#allocation4 + $0x40] sm:$0x1]
    %v661 = vlaneseq
    %v662 = vshrl.u32 %v661, 7
    %v663 = vsub.s32 0, %v662
    %v664 = vrot.slane %v660, %v663
    %v665 = vsel %vm354, %v126, 0
    %v667 = vsel %vm354, %v131, 0
    %v669 = vsel %vm354, %v206, 0
    %v671 = vsel %vm354, %v211, 0
    %v674 = vsel %vm384, %v659, 0
    %676 = vmatprep.subr.mxu0 0.0
    %677 = vmatpush1.msra.mxu0 %v674
    %678 = vmatprep.subr.mxu0 0.0
    %679 = vmatpush1.msra.mxu0 0.0
    %680 = vmatprep.subr.mxu0 0.0
    %681 = vmatpush1.msra.mxu0 0.0
    %682 = vmatprep.subr.mxu0 0.0
    %683 = vmatpush1.msra.mxu0 0.0
    %684 = vmatprep.subr.mxu0 0.0
    %685 = vmatpush1.msra.mxu0 0.0
    %686 = vmatprep.subr.mxu0 0.0
    %687 = vmatpush1.msra.mxu0 0.0
    %688 = vmatprep.subr.mxu0 0.0
    %689 = vmatpush1.msra.mxu0 0.0
    %690 = vmatprep.subr.mxu0 0.0
    %691 = vmatpush1.msra.mxu0 0.0
    %692 = vmatprep.subr.mxu0 0.0
    %693 = vmatpush1.msra.mxu0 0.0
    %694 = vmatprep.subr.mxu0 0.0
    %695 = vmatpush1.msra.mxu0 0.0
    %696 = vmatprep.subr.mxu0 0.0
    %697 = vmatpush1.msra.mxu0 0.0
    %698 = vmatprep.subr.mxu0 0.0
    %699 = vmatpush1.msra.mxu0 0.0
    %700 = vmatprep.subr.mxu0 0.0
    %701 = vmatpush1.msra.mxu0 0.0
    %702 = vmatprep.subr.mxu0 0.0
    %703 = vmatpush1.msra.mxu0 0.0
    %704 = vmatprep.subr.mxu0 0.0
    %705 = vmatpush1.msra.mxu0 0.0
    %706 = vmatprep.subr.mxu0 0.0
    %707 = vmatpush1.msra.mxu0 0.0
    %708 = vmatprep.subr.mxu0 0.0
    %709 = vmatpush1.msra.mxu0 0.0
    %710 = vmatprep.subr.mxu0 0.0
    %711 = vmatpush1.msra.mxu0 0.0
    %712 = vmatprep.subr.mxu0 0.0
    %713 = vmatpush1.msra.mxu0 0.0
    %714 = vmatprep.subr.mxu0 0.0
    %715 = vmatpush1.msra.mxu0 0.0
    %716 = vmatprep.subr.mxu0 0.0
    %717 = vmatpush1.msra.mxu0 0.0
    %718 = vmatprep.subr.mxu0 0.0
    %719 = vmatpush1.msra.mxu0 0.0
    %720 = vmatprep.subr.mxu0 0.0
    %721 = vmatpush1.msra.mxu0 0.0
    %722 = vmatprep.subr.mxu0 0.0
    %723 = vmatpush1.msra.mxu0 0.0
    %724 = vmatprep.subr.mxu0 0.0
    %725 = vmatpush1.msra.mxu0 0.0
    %726 = vmatprep.subr.mxu0 0.0
    %727 = vmatpush1.msra.mxu0 0.0
    %728 = vmatprep.subr.mxu0 0.0
    %729 = vmatpush1.msra.mxu0 0.0
    %730 = vmatprep.subr.mxu0 0.0
    %731 = vmatpush1.msra.mxu0 0.0
    %732 = vmatprep.subr.mxu0 0.0
    %733 = vmatpush1.msra.mxu0 0.0
    %734 = vmatprep.subr.mxu0 0.0
    %735 = vmatpush1.msra.mxu0 0.0
    %736 = vmatprep.subr.mxu0 0.0
    %737 = vmatpush1.msra.mxu0 0.0
    %738 = vmatprep.subr.mxu0 0.0
    %739 = vmatpush1.msra.mxu0 0.0
    %740 = vmatprep.mubr.f32.mxu0 0.0
    %741 = vmatmul.mubr.f32.gmra.mrb[0].mxu0 %v665
    %v742 = vpop.f32.mrb[0].mxu0
    %v743 = vadd.f32 %v664, %v742
    %v744 = vpop.f32.mrb[0].mxu0
    %745 = vmatprep.mubr.f32.mxu0 0.0
    %746 = vmatmul.mubr.f32.gmra.mrb[0].mxu0 %v667
    %v747 = vpop.f32.mrb[0].mxu0
    %v748 = vadd.f32 %v664, %v747
    %v749 = vpop.f32.mrb[0].mxu0
    %750 = vmatprep.mubr.f32.mxu0 0.0
    %751 = vmatmul.mubr.f32.gmra.mrb[0].mxu0 %v669
    %v752 = vpop.f32.mrb[0].mxu0
    %v753 = vadd.f32 %v664, %v752
    %v754 = vpop.f32.mrb[0].mxu0
    %755 = vmatprep.mubr.f32.mxu0 0.0
    %756 = vmatmul.mubr.f32.gmra.mrb[0].mxu0 %v671
    %v757 = vpop.f32.mrb[0].mxu0
    %v758 = vadd.f32 %v664, %v757
    %v759 = vpop.f32.mrb[0].mxu0
    %760 = vdwg.mxu0
    %v761 = vadd.f32 %v655, %v743
    %v762 = vadd.f32 %v656, %v748
    %v763 = vadd.f32 %v657, %v753
    %v764 = vadd.f32 %v658, %v758
    %v765 = vmax.f32 %v761, 0.0
    %v766 = vmax.f32 %v762, 0.0
    %v767 = vmax.f32 %v763, 0.0
    %v768 = vmax.f32 %v764, 0.0
    %v773 = vrot.slane %v765, 4
    %v774 = vrot.slane %v766, 4
    %v775 = vsel %vm384, %v773, %v774
    %v776 = vrot.slane %v767, 4
    %v777 = vsel %vm384, %v774, %v776
    %v778 = vrot.slane %v768, 4
    %v779 = vsel %vm384, %v776, %v778
    %v784 = vsel %vm384, 0.0, %v773
    %vm785 = vcmp.ge.s32.totalorder %v260, 4
    %vm786 = vcmp.ge.s32.totalorder %v261, 4
    %vm787 = vcmp.ge.s32.totalorder %v262, 4
    %vm788 = vcmp.ge.s32.totalorder %v263, 4
    %v789 = vsel %vm785, 1, 0
    %v790 = vsel %vm786, 1, 0
    %v791 = vsel %vm787, 1, 0
    %v792 = vsel %vm788, 1, 0
    %vm793 = vcmp.eq.s32.totalorder %v789, 1
    %vm794 = vcmp.eq.s32.totalorder %v790, 1
    %vm795 = vcmp.eq.s32.totalorder %v791, 1
    %vm796 = vcmp.eq.s32.totalorder %v792, 1
    %v797 = vsel %vm793, %v784, 0.0
    %v798 = vsel %vm794, %v775, 0.0
    %v799 = vsel %vm795, %v777, 0.0
    %v800 = vsel %vm796, %v779, 0.0
    %v801 = vrot.slane %v765, 6
    %v802 = vrot.slane %v766, 6
    %v803 = vsel %vm268, %v801, %v802
    %v804 = vrot.slane %v767, 6
    %v805 = vsel %vm268, %v802, %v804
    %v806 = vrot.slane %v768, 6
    %v807 = vsel %vm268, %v804, %v806
    %v812 = vsel %vm268, 0.0, %v801
    %v813 = vsel %vm289, %v812, 0.0
    %v814 = vsel %vm290, %v803, 0.0
    %v815 = vsel %vm291, %v805, 0.0
    %v816 = vsel %vm292, %v807, 0.0
    %821 = vrot.lane.b32.xlu0 %v813, 8
    %v822 = vpop.permute.xlu0 %821
    %823 = vrot.lane.b32.xlu0 %v814, 8
    %v824 = vpop.permute.xlu0 %823
    %825 = vrot.lane.b32.xlu0 %v815, 8
    %v826 = vpop.permute.xlu0 %825
    %827 = vrot.lane.b32.xlu0 %v816, 8
    %v828 = vpop.permute.xlu0 %827
    %833 = vrot.lane.b32.xlu0 %v765, 16
    %v834 = vpop.permute.xlu0 %833
    %835 = vrot.lane.b32.xlu0 %v766, 16
    %v836 = vpop.permute.xlu0 %835
    %837 = vrot.lane.b32.xlu0 %v767, 16
    %v838 = vpop.permute.xlu0 %837
    %839 = vrot.lane.b32.xlu0 %v768, 16
    %v840 = vpop.permute.xlu0 %839
    %v845 = vsel %vm359, %v797, %v822
    %v846 = vsel %vm359, %v798, %v824
    %v847 = vsel %vm359, %v799, %v826
    %v848 = vsel %vm359, %v800, %v828
    %v849 = vsel %vm49, %v845, %v834
    %v850 = vsel %vm49, %v846, %v836
    %v851 = vsel %vm49, %v847, %v838
    %v852 = vsel %vm49, %v848, %v840
    %v853 = vld [vmem:[#allocation4 + $0x48] sm:$0xff]
    %v854 = vld [vmem:[#allocation4 + $0x50] sm:$0xff]
    %v855 = vld [vmem:[#allocation4 + $0x58] sm:$0xff]
    %v856 = vld [vmem:[#allocation4 + $0x60] sm:$0x1]
    %v857 = vlaneseq
    %v858 = vshrl.u32 %v857, 7
    %v859 = vsub.s32 0, %v858
    %v860 = vrot.slane %v856, %v859
    %v862 = vsel %vm557, %v849, 0
    %v865 = vsel %vm557, %v850, 0
    %v868 = vsel %vm557, %v851, 0
    %v871 = vsel %vm557, %v852, 0
    %873 = vmatprep.subr.mxu0 0.0
    %874 = vmatpush1.msra.mxu0 %v853
    %875 = vmatprep.subr.mxu0 0.0
    %876 = vmatpush1.msra.mxu0 %v854
    %877 = vmatprep.subr.mxu0 0.0
    %878 = vmatpush1.msra.mxu0 %v855
    %879 = vmatprep.subr.mxu0 0.0
    %880 = vmatpush1.msra.mxu0 0.0
    %881 = vmatprep.subr.mxu0 0.0
    %882 = vmatpush1.msra.mxu0 0.0
    %883 = vmatprep.subr.mxu0 0.0
    %884 = vmatpush1.msra.mxu0 0.0
    %885 = vmatprep.subr.mxu0 0.0
    %886 = vmatpush1.msra.mxu0 0.0
    %887 = vmatprep.subr.mxu0 0.0
    %888 = vmatpush1.msra.mxu0 0.0
    %889 = vmatprep.subr.mxu0 0.0
    %890 = vmatpush1.msra.mxu0 0.0
    %891 = vmatprep.subr.mxu0 0.0
    %892 = vmatpush1.msra.mxu0 0.0
    %893 = vmatprep.subr.mxu0 0.0
    %894 = vmatpush1.msra.mxu0 0.0
    %895 = vmatprep.subr.mxu0 0.0
    %896 = vmatpush1.msra.mxu0 0.0
    %897 = vmatprep.subr.mxu0 0.0
    %898 = vmatpush1.msra.mxu0 0.0
    %899 = vmatprep.subr.mxu0 0.0
    %900 = vmatpush1.msra.mxu0 0.0
    %901 = vmatprep.subr.mxu0 0.0
    %902 = vmatpush1.msra.mxu0 0.0
    %903 = vmatprep.subr.mxu0 0.0
    %904 = vmatpush1.msra.mxu0 0.0
    %905 = vmatprep.subr.mxu0 0.0
    %906 = vmatpush1.msra.mxu0 0.0
    %907 = vmatprep.subr.mxu0 0.0
    %908 = vmatpush1.msra.mxu0 0.0
    %909 = vmatprep.subr.mxu0 0.0
    %910 = vmatpush1.msra.mxu0 0.0
    %911 = vmatprep.subr.mxu0 0.0
    %912 = vmatpush1.msra.mxu0 0.0
    %913 = vmatprep.subr.mxu0 0.0
    %914 = vmatpush1.msra.mxu0 0.0
    %915 = vmatprep.subr.mxu0 0.0
    %916 = vmatpush1.msra.mxu0 0.0
    %917 = vmatprep.subr.mxu0 0.0
    %918 = vmatpush1.msra.mxu0 0.0
    %919 = vmatprep.subr.mxu0 0.0
    %920 = vmatpush1.msra.mxu0 0.0
    %921 = vmatprep.subr.mxu0 0.0
    %922 = vmatpush1.msra.mxu0 0.0
    %923 = vmatprep.subr.mxu0 0.0
    %924 = vmatpush1.msra.mxu0 0.0
    %925 = vmatprep.subr.mxu0 0.0
    %926 = vmatpush1.msra.mxu0 0.0
    %927 = vmatprep.subr.mxu0 0.0
    %928 = vmatpush1.msra.mxu0 0.0
    %929 = vmatprep.subr.mxu0 0.0
    %930 = vmatpush1.msra.mxu0 0.0
    %931 = vmatprep.subr.mxu0 0.0
    %932 = vmatpush1.msra.mxu0 0.0
    %933 = vmatprep.subr.mxu0 0.0
    %934 = vmatpush1.msra.mxu0 0.0
    %935 = vmatprep.subr.mxu0 0.0
    %936 = vmatpush1.msra.mxu0 0.0
    %937 = vmatprep.mubr.f32.mxu0 0.0
    %938 = vmatmul.mubr.f32.gmra.mrb[0].mxu0 %v862
    %v939 = vpop.f32.mrb[0].mxu0
    %v940 = vadd.f32 %v860, %v939
    %v941 = vpop.f32.mrb[0].mxu0
    %942 = vmatprep.mubr.f32.mxu0 0.0
    %943 = vmatmul.mubr.f32.gmra.mrb[0].mxu0 %v865
    %v944 = vpop.f32.mrb[0].mxu0
    %v945 = vadd.f32 %v860, %v944
    %v946 = vpop.f32.mrb[0].mxu0
    %947 = vmatprep.mubr.f32.mxu0 0.0
    %948 = vmatmul.mubr.f32.gmra.mrb[0].mxu0 %v868
    %v949 = vpop.f32.mrb[0].mxu0
    %v950 = vadd.f32 %v860, %v949
    %v951 = vpop.f32.mrb[0].mxu0
    %952 = vmatprep.mubr.f32.mxu0 0.0
    %953 = vmatmul.mubr.f32.gmra.mrb[0].mxu0 %v871
    %v954 = vpop.f32.mrb[0].mxu0
    %v955 = vadd.f32 %v860, %v954
    %v956 = vpop.f32.mrb[0].mxu0
    %957 = vdwg.mxu0
    %v958 = vmax.f32 %v940, 0.0
    %v959 = vmax.f32 %v945, 0.0
    %v960 = vmax.f32 %v950, 0.0
    %v961 = vmax.f32 %v955, 0.0
    %v966 = vrot.slane %v958, 4
    %v967 = vrot.slane %v959, 4
    %v968 = vsel %vm384, %v966, %v967
    %v969 = vrot.slane %v960, 4
    %v970 = vsel %vm384, %v967, %v969
    %v971 = vrot.slane %v961, 4
    %v972 = vsel %vm384, %v969, %v971
    %v977 = vsel %vm384, 0.0, %v966
    %v978 = vsel %vm793, %v977, 0.0
    %v979 = vsel %vm794, %v968, 0.0
    %v980 = vsel %vm795, %v970, 0.0
    %v981 = vsel %vm796, %v972, 0.0
    %v982 = vrot.slane %v958, 6
    %v983 = vrot.slane %v959, 6
    %v984 = vsel %vm268, %v982, %v983
    %v985 = vrot.slane %v960, 6
    %v986 = vsel %vm268, %v983, %v985
    %v987 = vrot.slane %v961, 6
    %v988 = vsel %vm268, %v985, %v987
    %v993 = vsel %vm268, 0.0, %v982
    %v994 = vsel %vm289, %v993, 0.0
    %v995 = vsel %vm290, %v984, 0.0
    %v996 = vsel %vm291, %v986, 0.0
    %v997 = vsel %vm292, %v988, 0.0
    %1002 = vrot.lane.b32.xlu0 %v994, 8
    %v1003 = vpop.permute.xlu0 %1002
    %1004 = vrot.lane.b32.xlu0 %v995, 8
    %v1005 = vpop.permute.xlu0 %1004
    %1006 = vrot.lane.b32.xlu0 %v996, 8
    %v1007 = vpop.permute.xlu0 %1006
    %1008 = vrot.lane.b32.xlu0 %v997, 8
    %v1009 = vpop.permute.xlu0 %1008
    %1014 = vrot.lane.b32.xlu0 %v958, 16
    %v1015 = vpop.permute.xlu0 %1014
    %1016 = vrot.lane.b32.xlu0 %v959, 16
    %v1017 = vpop.permute.xlu0 %1016
    %1018 = vrot.lane.b32.xlu0 %v960, 16
    %v1019 = vpop.permute.xlu0 %1018
    %1020 = vrot.lane.b32.xlu0 %v961, 16
    %v1021 = vpop.permute.xlu0 %1020
    %v1026 = vsel %vm359, %v978, %v1003
    %v1027 = vsel %vm359, %v979, %v1005
    %v1028 = vsel %vm359, %v980, %v1007
    %v1029 = vsel %vm359, %v981, %v1009
    %v1030 = vsel %vm49, %v1026, %v1015
    %v1031 = vsel %vm49, %v1027, %v1017
    %v1032 = vsel %vm49, %v1028, %v1019
    %v1033 = vsel %vm49, %v1029, %v1021
    %v1034 = vld [vmem:[#allocation4 + $0x68] sm:$0xff]
    %v1035 = vld [vmem:[#allocation4 + $0x70] sm:$0xff]
    %v1036 = vld [vmem:[#allocation4 + $0x78] sm:$0xff]
    %v1037 = vld [vmem:[#allocation4 + $0x80] sm:$0x1]
    %v1038 = vlaneseq
    %v1039 = vshrl.u32 %v1038, 7
    %v1040 = vsub.s32 0, %v1039
    %v1041 = vrot.slane %v1037, %v1040
    %v1043 = vsel %vm557, %v1030, 0
    %v1046 = vsel %vm557, %v1031, 0
    %v1049 = vsel %vm557, %v1032, 0
    %v1052 = vsel %vm557, %v1033, 0
    %1054 = vmatprep.subr.mxu0 0.0
    %1055 = vmatpush1.msra.mxu0 %v1034
    %1056 = vmatprep.subr.mxu0 0.0
    %1057 = vmatpush1.msra.mxu0 %v1035
    %1058 = vmatprep.subr.mxu0 0.0
    %1059 = vmatpush1.msra.mxu0 %v1036
    %1060 = vmatprep.subr.mxu0 0.0
    %1061 = vmatpush1.msra.mxu0 0.0
    %1062 = vmatprep.subr.mxu0 0.0
    %1063 = vmatpush1.msra.mxu0 0.0
    %1064 = vmatprep.subr.mxu0 0.0
    %1065 = vmatpush1.msra.mxu0 0.0
    %1066 = vmatprep.subr.mxu0 0.0
    %1067 = vmatpush1.msra.mxu0 0.0
    %1068 = vmatprep.subr.mxu0 0.0
    %1069 = vmatpush1.msra.mxu0 0.0
    %1070 = vmatprep.subr.mxu0 0.0
    %1071 = vmatpush1.msra.mxu0 0.0
    %1072 = vmatprep.subr.mxu0 0.0
    %1073 = vmatpush1.msra.mxu0 0.0
    %1074 = vmatprep.subr.mxu0 0.0
    %1075 = vmatpush1.msra.mxu0 0.0
    %1076 = vmatprep.subr.mxu0 0.0
    %1077 = vmatpush1.msra.mxu0 0.0
    %1078 = vmatprep.subr.mxu0 0.0
    %1079 = vmatpush1.msra.mxu0 0.0
    %1080 = vmatprep.subr.mxu0 0.0
    %1081 = vmatpush1.msra.mxu0 0.0
    %1082 = vmatprep.subr.mxu0 0.0
    %1083 = vmatpush1.msra.mxu0 0.0
    %1084 = vmatprep.subr.mxu0 0.0
    %1085 = vmatpush1.msra.mxu0 0.0
    %1086 = vmatprep.subr.mxu0 0.0
    %1087 = vmatpush1.msra.mxu0 0.0
    %1088 = vmatprep.subr.mxu0 0.0
    %1089 = vmatpush1.msra.mxu0 0.0
    %1090 = vmatprep.subr.mxu0 0.0
    %1091 = vmatpush1.msra.mxu0 0.0
    %1092 = vmatprep.subr.mxu0 0.0
    %1093 = vmatpush1.msra.mxu0 0.0
    %1094 = vmatprep.subr.mxu0 0.0
    %1095 = vmatpush1.msra.mxu0 0.0
    %1096 = vmatprep.subr.mxu0 0.0
    %1097 = vmatpush1.msra.mxu0 0.0
    %1098 = vmatprep.subr.mxu0 0.0
    %1099 = vmatpush1.msra.mxu0 0.0
    %1100 = vmatprep.subr.mxu0 0.0
    %1101 = vmatpush1.msra.mxu0 0.0
    %1102 = vmatprep.subr.mxu0 0.0
    %1103 = vmatpush1.msra.mxu0 0.0
    %1104 = vmatprep.subr.mxu0 0.0
    %1105 = vmatpush1.msra.mxu0 0.0
    %1106 = vmatprep.subr.mxu0 0.0
    %1107 = vmatpush1.msra.mxu0 0.0
    %1108 = vmatprep.subr.mxu0 0.0
    %1109 = vmatpush1.msra.mxu0 0.0
    %1110 = vmatprep.subr.mxu0 0.0
    %1111 = vmatpush1.msra.mxu0 0.0
    %1112 = vmatprep.subr.mxu0 0.0
    %1113 = vmatpush1.msra.mxu0 0.0
    %1114 = vmatprep.subr.mxu0 0.0
    %1115 = vmatpush1.msra.mxu0 0.0
    %1116 = vmatprep.subr.mxu0 0.0
    %1117 = vmatpush1.msra.mxu0 0.0
    %1118 = vmatprep.mubr.f32.mxu0 0.0
    %1119 = vmatmul.mubr.f32.gmra.mrb[0].mxu0 %v1043
    %v1120 = vpop.f32.mrb[0].mxu0
    %v1121 = vadd.f32 %v1041, %v1120
    %v1122 = vpop.f32.mrb[0].mxu0
    %1123 = vmatprep.mubr.f32.mxu0 0.0
    %1124 = vmatmul.mubr.f32.gmra.mrb[0].mxu0 %v1046
    %v1125 = vpop.f32.mrb[0].mxu0
    %v1126 = vadd.f32 %v1041, %v1125
    %v1127 = vpop.f32.mrb[0].mxu0
    %1128 = vmatprep.mubr.f32.mxu0 0.0
    %1129 = vmatmul.mubr.f32.gmra.mrb[0].mxu0 %v1049
    %v1130 = vpop.f32.mrb[0].mxu0
    %v1131 = vadd.f32 %v1041, %v1130
    %v1132 = vpop.f32.mrb[0].mxu0
    %1133 = vmatprep.mubr.f32.mxu0 0.0
    %1134 = vmatmul.mubr.f32.gmra.mrb[0].mxu0 %v1052
    %v1135 = vpop.f32.mrb[0].mxu0
    %v1136 = vadd.f32 %v1041, %v1135
    %v1137 = vpop.f32.mrb[0].mxu0
    %1138 = vdwg.mxu0
    %v1139 = vmax.f32 %v1121, 0.0
    %v1140 = vmax.f32 %v1126, 0.0
    %v1141 = vmax.f32 %v1131, 0.0
    %v1142 = vmax.f32 %v1136, 0.0
    %v1143 = vadd.f32 %v1139, %v765
    %v1144 = vadd.f32 %v1140, %v766
    %v1145 = vadd.f32 %v1141, %v767
    %v1146 = vadd.f32 %v1142, %v768
    %v1147 = vmax.f32 %v1143, 0.0
    %v1148 = vmax.f32 %v1144, 0.0
    %v1149 = vmax.f32 %v1145, 0.0
    %v1150 = vmax.f32 %v1146, 0.0
    %v1151 = vld [vmem:[#allocation4 + $0x88] sm:$0xff]
    %v1152 = vld [vmem:[#allocation4 + $0x90] sm:$0x1]
    %v1153 = vlaneseq
    %v1154 = vshrl.u32 %v1153, 7
    %v1155 = vsub.s32 0, %v1154
    %v1156 = vrot.slane %v1152, %v1155
    %v1158 = vsel %vm359, %v1147, 0
    %v1161 = vsel %vm359, %v1148, 0
    %v1164 = vsel %vm359, %v1149, 0
    %v1167 = vsel %vm359, %v1150, 0
    %1169 = vmatprep.subr.mxu0 0.0
    %1170 = vmatpush1.msra.mxu0 %v1151
    %1171 = vmatprep.subr.mxu0 0.0
    %1172 = vmatpush1.msra.mxu0 0.0
    %1173 = vmatprep.subr.mxu0 0.0
    %1174 = vmatpush1.msra.mxu0 0.0
    %1175 = vmatprep.subr.mxu0 0.0
    %1176 = vmatpush1.msra.mxu0 0.0
    %1177 = vmatprep.subr.mxu0 0.0
    %1178 = vmatpush1.msra.mxu0 0.0
    %1179 = vmatprep.subr.mxu0 0.0
    %1180 = vmatpush1.msra.mxu0 0.0
    %1181 = vmatprep.subr.mxu0 0.0
    %1182 = vmatpush1.msra.mxu0 0.0
    %1183 = vmatprep.subr.mxu0 0.0
    %1184 = vmatpush1.msra.mxu0 0.0
    %1185 = vmatprep.subr.mxu0 0.0
    %1186 = vmatpush1.msra.mxu0 0.0
    %1187 = vmatprep.subr.mxu0 0.0
    %1188 = vmatpush1.msra.mxu0 0.0
    %1189 = vmatprep.subr.mxu0 0.0
    %1190 = vmatpush1.msra.mxu0 0.0
    %1191 = vmatprep.subr.mxu0 0.0
    %1192 = vmatpush1.msra.mxu0 0.0
    %1193 = vmatprep.subr.mxu0 0.0
    %1194 = vmatpush1.msra.mxu0 0.0
    %1195 = vmatprep.subr.mxu0 0.0
    %1196 = vmatpush1.msra.mxu0 0.0
    %1197 = vmatprep.subr.mxu0 0.0
    %1198 = vmatpush1.msra.mxu0 0.0
    %1199 = vmatprep.subr.mxu0 0.0
    %1200 = vmatpush1.msra.mxu0 0.0
    %1201 = vmatprep.subr.mxu0 0.0
    %1202 = vmatpush1.msra.mxu0 0.0
    %1203 = vmatprep.subr.mxu0 0.0
    %1204 = vmatpush1.msra.mxu0 0.0
    %1205 = vmatprep.subr.mxu0 0.0
    %1206 = vmatpush1.msra.mxu0 0.0
    %1207 = vmatprep.subr.mxu0 0.0
    %1208 = vmatpush1.msra.mxu0 0.0
    %1209 = vmatprep.subr.mxu0 0.0
    %1210 = vmatpush1.msra.mxu0 0.0
    %1211 = vmatprep.subr.mxu0 0.0
    %1212 = vmatpush1.msra.mxu0 0.0
    %1213 = vmatprep.subr.mxu0 0.0
    %1214 = vmatpush1.msra.mxu0 0.0
    %1215 = vmatprep.subr.mxu0 0.0
    %1216 = vmatpush1.msra.mxu0 0.0
    %1217 = vmatprep.subr.mxu0 0.0
    %1218 = vmatpush1.msra.mxu0 0.0
    %1219 = vmatprep.subr.mxu0 0.0
    %1220 = vmatpush1.msra.mxu0 0.0
    %1221 = vmatprep.subr.mxu0 0.0
    %1222 = vmatpush1.msra.mxu0 0.0
    %1223 = vmatprep.subr.mxu0 0.0
    %1224 = vmatpush1.msra.mxu0 0.0
    %1225 = vmatprep.subr.mxu0 0.0
    %1226 = vmatpush1.msra.mxu0 0.0
    %1227 = vmatprep.subr.mxu0 0.0
    %1228 = vmatpush1.msra.mxu0 0.0
    %1229 = vmatprep.subr.mxu0 0.0
    %1230 = vmatpush1.msra.mxu0 0.0
    %1231 = vmatprep.subr.mxu0 0.0
    %1232 = vmatpush1.msra.mxu0 0.0
    %1233 = vmatprep.mubr.f32.mxu0 0.0
    %1234 = vmatmul.mubr.f32.gmra.mrb[0].mxu0 %v1158
    %v1235 = vpop.f32.mrb[0].mxu0
    %v1236 = vadd.f32 %v1156, %v1235
    %v1237 = vpop.f32.mrb[0].mxu0
    %1238 = vmatprep.mubr.f32.mxu0 0.0
    %1239 = vmatmul.mubr.f32.gmra.mrb[0].mxu0 %v1161
    %v1240 = vpop.f32.mrb[0].mxu0
    %v1241 = vadd.f32 %v1156, %v1240
    %v1242 = vpop.f32.mrb[0].mxu0
    %1243 = vmatprep.mubr.f32.mxu0 0.0
    %1244 = vmatmul.mubr.f32.gmra.mrb[0].mxu0 %v1164
    %v1245 = vpop.f32.mrb[0].mxu0
    %v1246 = vadd.f32 %v1156, %v1245
    %v1247 = vpop.f32.mrb[0].mxu0
    %1248 = vmatprep.mubr.f32.mxu0 0.0
    %1249 = vmatmul.mubr.f32.gmra.mrb[0].mxu0 %v1167
    %v1250 = vpop.f32.mrb[0].mxu0
    %v1251 = vadd.f32 %v1156, %v1250
    %v1252 = vpop.f32.mrb[0].mxu0
    %1253 = vdwg.mxu0
    %vm1254 = vcmask 23552
    %v1255 = vsel %vm1254, %v46, 0
    %v1258 = vsel %vm1254, %v1236, 0
    %v1261 = vsel %vm1254, %v1241, 0
    %v1264 = vsel %vm1254, %v1246, 0
    %v1267 = vsel %vm1254, %v1251, 0
    %1269 = vmatprep.subr.mxu0 0.0
    %1270 = vmatpush1.xpose.msra.mxu0 %v1258
    %1271 = vmatprep.subr.mxu0 0.0
    %1272 = vmatpush1.xpose.msra.mxu0 %v1261
    %1273 = vmatprep.subr.mxu0 0.0
    %1274 = vmatpush1.xpose.msra.mxu0 %v1264
    %1275 = vmatprep.subr.mxu0 0.0
    %1276 = vmatpush1.xpose.msra.mxu0 %v1267
    %1277 = vmatprep.subr.mxu0 0.0
    %1278 = vmatpush1.xpose.msra.mxu0 0.0
    %1279 = vmatprep.subr.mxu0 0.0
    %1280 = vmatpush1.xpose.msra.mxu0 0.0
    %1281 = vmatprep.subr.mxu0 0.0
    %1282 = vmatpush1.xpose.msra.mxu0 0.0
    %1283 = vmatprep.subr.mxu0 0.0
    %1284 = vmatpush1.xpose.msra.mxu0 0.0
    %1285 = vmatprep.subr.mxu0 0.0
    %1286 = vmatpush1.xpose.msra.mxu0 0.0
    %1287 = vmatprep.subr.mxu0 0.0
    %1288 = vmatpush1.xpose.msra.mxu0 0.0
    %1289 = vmatprep.subr.mxu0 0.0
    %1290 = vmatpush1.xpose.msra.mxu0 0.0
    %1291 = vmatprep.subr.mxu0 0.0
    %1292 = vmatpush1.xpose.msra.mxu0 0.0
    %1293 = vmatprep.subr.mxu0 0.0
    %1294 = vmatpush1.xpose.msra.mxu0 0.0
    %1295 = vmatprep.subr.mxu0 0.0
    %1296 = vmatpush1.xpose.msra.mxu0 0.0
    %1297 = vmatprep.subr.mxu0 0.0
    %1298 = vmatpush1.xpose.msra.mxu0 0.0
    %1299 = vmatprep.subr.mxu0 0.0
    %1300 = vmatpush1.xpose.msra.mxu0 0.0
    %1301 = vmatprep.subr.mxu0 0.0
    %1302 = vmatpush1.xpose.msra.mxu0 0.0
    %1303 = vmatprep.subr.mxu0 0.0
    %1304 = vmatpush1.xpose.msra.mxu0 0.0
    %1305 = vmatprep.subr.mxu0 0.0
    %1306 = vmatpush1.xpose.msra.mxu0 0.0
    %1307 = vmatprep.subr.mxu0 0.0
    %1308 = vmatpush1.xpose.msra.mxu0 0.0
    %1309 = vmatprep.subr.mxu0 0.0
    %1310 = vmatpush1.xpose.msra.mxu0 0.0
    %1311 = vmatprep.subr.mxu0 0.0
    %1312 = vmatpush1.xpose.msra.mxu0 0.0
    %1313 = vmatprep.subr.mxu0 0.0
    %1314 = vmatpush1.xpose.msra.mxu0 0.0
    %1315 = vmatprep.subr.mxu0 0.0
    %1316 = vmatpush1.xpose.msra.mxu0 0.0
    %1317 = vmatprep.subr.mxu0 0.0
    %1318 = vmatpush1.xpose.msra.mxu0 0.0
    %1319 = vmatprep.subr.mxu0 0.0
    %1320 = vmatpush1.xpose.msra.mxu0 0.0
    %1321 = vmatprep.subr.mxu0 0.0
    %1322 = vmatpush1.xpose.msra.mxu0 0.0
    %1323 = vmatprep.subr.mxu0 0.0
    %1324 = vmatpush1.xpose.msra.mxu0 0.0
    %1325 = vmatprep.subr.mxu0 0.0
    %1326 = vmatpush1.xpose.msra.mxu0 0.0
    %1327 = vmatprep.subr.mxu0 0.0
    %1328 = vmatpush1.xpose.msra.mxu0 0.0
    %1329 = vmatprep.subr.mxu0 0.0
    %1330 = vmatpush1.xpose.msra.mxu0 0.0
    %1331 = vmatprep.subr.mxu0 0.0
    %1332 = vmatpush1.xpose.msra.mxu0 0.0
    %1333 = vmatprep.mubr.f32.mxu0 0.0
    %1334 = vmatmul.mubr.f32.gmra.mrb[0].mxu0 %v1255
    %v1335 = vpop.f32.mrb[0].mxu0
    %v1336 = vadd.f32 0.0, %v1335
    %v1337 = vpop.f32.mrb[0].mxu0
    %1338 = vdwg.mxu0
    %v1339 = vld [vmem:[#allocation4 + $0x98] sm:$0xff]
    %v1340 = vld [vmem:[#allocation4 + $0xa0] sm:$0xff]
    %v1341 = vld [vmem:[#allocation4 + $0xa8] sm:$0x1]
    %v1342 = vlaneseq
    %v1343 = vshrl.u32 %v1342, 7
    %v1344 = vsub.s32 0, %v1343
    %v1345 = vrot.slane %v1341, %v1344
    %v1347 = vsel %vm49, %v1336, 0
    %1349 = vmatprep.subr.mxu0 0.0
    %1350 = vmatpush1.msra.mxu0 %v1339
    %1351 = vmatprep.subr.mxu0 0.0
    %1352 = vmatpush1.msra.mxu0 %v1340
    %1353 = vmatprep.subr.mxu0 0.0
    %1354 = vmatpush1.msra.mxu0 0.0
    %1355 = vmatprep.subr.mxu0 0.0
    %1356 = vmatpush1.msra.mxu0 0.0
    %1357 = vmatprep.subr.mxu0 0.0
    %1358 = vmatpush1.msra.mxu0 0.0
    %1359 = vmatprep.subr.mxu0 0.0
    %1360 = vmatpush1.msra.mxu0 0.0
    %1361 = vmatprep.subr.mxu0 0.0
    %1362 = vmatpush1.msra.mxu0 0.0
    %1363 = vmatprep.subr.mxu0 0.0
    %1364 = vmatpush1.msra.mxu0 0.0
    %1365 = vmatprep.subr.mxu0 0.0
    %1366 = vmatpush1.msra.mxu0 0.0
    %1367 = vmatprep.subr.mxu0 0.0
    %1368 = vmatpush1.msra.mxu0 0.0
    %1369 = vmatprep.subr.mxu0 0.0
    %1370 = vmatpush1.msra.mxu0 0.0
    %1371 = vmatprep.subr.mxu0 0.0
    %1372 = vmatpush1.msra.mxu0 0.0
    %1373 = vmatprep.subr.mxu0 0.0
    %1374 = vmatpush1.msra.mxu0 0.0
    %1375 = vmatprep.subr.mxu0 0.0
    %1376 = vmatpush1.msra.mxu0 0.0
    %1377 = vmatprep.subr.mxu0 0.0
    %1378 = vmatpush1.msra.mxu0 0.0
    %1379 = vmatprep.subr.mxu0 0.0
    %1380 = vmatpush1.msra.mxu0 0.0
    %1381 = vmatprep.subr.mxu0 0.0
    %1382 = vmatpush1.msra.mxu0 0.0
    %1383 = vmatprep.subr.mxu0 0.0
    %1384 = vmatpush1.msra.mxu0 0.0
    %1385 = vmatprep.subr.mxu0 0.0
    %1386 = vmatpush1.msra.mxu0 0.0
    %1387 = vmatprep.subr.mxu0 0.0
    %1388 = vmatpush1.msra.mxu0 0.0
    %1389 = vmatprep.subr.mxu0 0.0
    %1390 = vmatpush1.msra.mxu0 0.0
    %1391 = vmatprep.subr.mxu0 0.0
    %1392 = vmatpush1.msra.mxu0 0.0
    %1393 = vmatprep.subr.mxu0 0.0
    %1394 = vmatpush1.msra.mxu0 0.0
    %1395 = vmatprep.subr.mxu0 0.0
    %1396 = vmatpush1.msra.mxu0 0.0
    %1397 = vmatprep.subr.mxu0 0.0
    %1398 = vmatpush1.msra.mxu0 0.0
    %1399 = vmatprep.subr.mxu0 0.0
    %1400 = vmatpush1.msra.mxu0 0.0
    %1401 = vmatprep.subr.mxu0 0.0
    %1402 = vmatpush1.msra.mxu0 0.0
    %1403 = vmatprep.subr.mxu0 0.0
    %1404 = vmatpush1.msra.mxu0 0.0
    %1405 = vmatprep.subr.mxu0 0.0
    %1406 = vmatpush1.msra.mxu0 0.0
    %1407 = vmatprep.subr.mxu0 0.0
    %1408 = vmatpush1.msra.mxu0 0.0
    %1409 = vmatprep.subr.mxu0 0.0
    %1410 = vmatpush1.msra.mxu0 0.0
    %1411 = vmatprep.subr.mxu0 0.0
    %1412 = vmatpush1.msra.mxu0 0.0
    %1413 = vmatprep.mubr.f32.mxu0 0.0
    %1414 = vmatmul.mubr.f32.gmra.mrb[0].mxu0 %v1347
    %v1415 = vpop.f32.mrb[0].mxu0
    %v1416 = vadd.f32 %v1345, %v1415
    %v1417 = vpop.f32.mrb[0].mxu0
    %1418 = vdwg.mxu0
    %1419 = vrot.lane.b32.xlu0 %v1336, 112
    %v1420 = vpop.permute.xlu0 %1419
    %v1421 = vsel %vm49, %v1420, 0
    %1423 = vmatprep.subr.mxu0 0.0
    %1424 = vmatpush1.msra.mxu0 %v1339
    %1425 = vmatprep.subr.mxu0 0.0
    %1426 = vmatpush1.msra.mxu0 %v1340
    %1427 = vmatprep.subr.mxu0 0.0
    %1428 = vmatpush1.msra.mxu0 0.0
    %1429 = vmatprep.subr.mxu0 0.0
    %1430 = vmatpush1.msra.mxu0 0.0
    %1431 = vmatprep.subr.mxu0 0.0
    %1432 = vmatpush1.msra.mxu0 0.0
    %1433 = vmatprep.subr.mxu0 0.0
    %1434 = vmatpush1.msra.mxu0 0.0
    %1435 = vmatprep.subr.mxu0 0.0
    %1436 = vmatpush1.msra.mxu0 0.0
    %1437 = vmatprep.subr.mxu0 0.0
    %1438 = vmatpush1.msra.mxu0 0.0
    %1439 = vmatprep.subr.mxu0 0.0
    %1440 = vmatpush1.msra.mxu0 0.0
    %1441 = vmatprep.subr.mxu0 0.0
    %1442 = vmatpush1.msra.mxu0 0.0
    %1443 = vmatprep.subr.mxu0 0.0
    %1444 = vmatpush1.msra.mxu0 0.0
    %1445 = vmatprep.subr.mxu0 0.0
    %1446 = vmatpush1.msra.mxu0 0.0
    %1447 = vmatprep.subr.mxu0 0.0
    %1448 = vmatpush1.msra.mxu0 0.0
    %1449 = vmatprep.subr.mxu0 0.0
    %1450 = vmatpush1.msra.mxu0 0.0
    %1451 = vmatprep.subr.mxu0 0.0
    %1452 = vmatpush1.msra.mxu0 0.0
    %1453 = vmatprep.subr.mxu0 0.0
    %1454 = vmatpush1.msra.mxu0 0.0
    %1455 = vmatprep.subr.mxu0 0.0
    %1456 = vmatpush1.msra.mxu0 0.0
    %1457 = vmatprep.subr.mxu0 0.0
    %1458 = vmatpush1.msra.mxu0 0.0
    %1459 = vmatprep.subr.mxu0 0.0
    %1460 = vmatpush1.msra.mxu0 0.0
    %1461 = vmatprep.subr.mxu0 0.0
    %1462 = vmatpush1.msra.mxu0 0.0
    %1463 = vmatprep.subr.mxu0 0.0
    %1464 = vmatpush1.msra.mxu0 0.0
    %1465 = vmatprep.subr.mxu0 0.0
    %1466 = vmatpush1.msra.mxu0 0.0
    %1467 = vmatprep.subr.mxu0 0.0
    %1468 = vmatpush1.msra.mxu0 0.0
    %1469 = vmatprep.subr.mxu0 0.0
    %1470 = vmatpush1.msra.mxu0 0.0
    %1471 = vmatprep.subr.mxu0 0.0
    %1472 = vmatpush1.msra.mxu0 0.0
    %1473 = vmatprep.subr.mxu0 0.0
    %1474 = vmatpush1.msra.mxu0 0.0
    %1475 = vmatprep.subr.mxu0 0.0
    %1476 = vmatpush1.msra.mxu0 0.0
    %1477 = vmatprep.subr.mxu0 0.0
    %1478 = vmatpush1.msra.mxu0 0.0
    %1479 = vmatprep.subr.mxu0 0.0
    %1480 = vmatpush1.msra.mxu0 0.0
    %1481 = vmatprep.subr.mxu0 0.0
    %1482 = vmatpush1.msra.mxu0 0.0
    %1483 = vmatprep.subr.mxu0 0.0
    %1484 = vmatpush1.msra.mxu0 0.0
    %1485 = vmatprep.subr.mxu0 0.0
    %1486 = vmatpush1.msra.mxu0 0.0
    %1487 = vmatprep.mubr.f32.mxu0 0.0
    %1488 = vmatmul.mubr.f32.gmra.mrb[0].mxu0 %v1421
    %v1489 = vpop.f32.mrb[0].mxu0
    %v1490 = vadd.f32 %v1345, %v1489
    %v1491 = vpop.f32.mrb[0].mxu0
    %1492 = vdwg.mxu0
    %vm1493 = vcmask 2048
    %1494 = vst.msk [vmem:[%s2] sm:$0x7] %vm1493, %v1416
    %1495 = vst.msk [vmem:[%s2 + $0x4] sm:$0x7] %vm1493, %v1490
    // Predicated region
    $region18: #{tcn_block_fading_forward.1} parent=1 // pred_check
      _
    $region19: #{tcn_block_fading_forward.1} parent=1 // pred_check_branch
      %1497 = sbr.rel (0) target = $region21
    $region20: #{tcn_block_fading_forward.1} parent=1 // pred_region
      _
    $region21: #{tcn_block_fading_forward.1} parent=1 // pred_fallthru
      _
    // Predicated region
    $region22: #{tcn_block_fading_forward.1} parent=1 // pred_check
      _
    $region23: #{tcn_block_fading_forward.1} parent=1 // pred_check_branch
      %1499 = sbr.rel (0) target = $region25
    $region24: #{tcn_block_fading_forward.1} parent=1 // pred_region
      _
    $region25: #{tcn_block_fading_forward.1} parent=1 // pred_fallthru
      _
    %1500 = vsyncpa [#allocation3], 1
    %1501 = vsyncpa [#allocation5], 1

</llo_original>
